<compile_context>
chip_gen: v7x
topology: tpu7x:2x2x1
jax: 0.10.0
libtpu: 0.0.40
codegen_flags: <defaults>
</compile_context>

<pallas_src>
import numpy as np
import jax
import jax.numpy as jnp
from jax.experimental import pallas as pl
from jax.experimental.pallas import tpu as pltpu

FEATURES = 4          # len(['시가', '고가', '저가', '종가'])
HIDDEN = 20           # PyTorch hidden size
HIDDEN_PAD = 32       # kernel-internal padded hidden: 4*32 = 128 lanes = 1 full vreg
# PyTorch gate order (i, f, g, o)  ->  kernel internal order (i, f, o, g)
_GATE_PERM = np.array((0, 1, 3, 2))


def _lstm_fc_kernel(x_ref, wih1_ref, whh1_ref, b1_ref,
                    wih2_ref, whh2_ref, b2_ref,
                    wfc_ref, bfc_ref, out_ref):
    """2-layer LSTM recurrence + final FC, entirely in VMEM (no grid)."""
    B = out_ref.shape[0]
    TB, _ = x_ref.shape
    T = TB // B
    HP = whh1_ref.shape[0]          # padded hidden (32)
    G = 4 * HP                      # 128 lanes

    # ---- Pre-loop, off the serial chain: layer-1 input projection for ALL
    # timesteps at once, plus the fused (b_ih + b_hh) bias.  xp row t*B+b. ----
    xp = (jnp.dot(x_ref[...], wih1_ref[...], preferred_element_type=jnp.float32)
          + jnp.broadcast_to(b1_ref[...], (TB, G)))

    whh1 = whh1_ref[...]            # (HP, G)
    wih2 = wih2_ref[...]            # (HP, G)
    whh2 = whh2_ref[...]            # (HP, G)
    b2 = jnp.broadcast_to(b2_ref[...], (B, G))   # hoisted once, not per step

    def gates_to_hc(g, c):
        # gate order (i, f, o, g): one contiguous sigmoid slice + one tanh slice.
        s = jax.nn.sigmoid(g[:, :3 * HP])
        i, f, o = s[:, :HP], s[:, HP:2 * HP], s[:, 2 * HP:]
        ct = jnp.tanh(g[:, 3 * HP:])
        c_new = f * c + i * ct
        h_new = o * jnp.tanh(c_new)
        return h_new, c_new

    zeros = jnp.zeros((B, HP), jnp.float32)
    h1 = c1 = h2 = c2 = zeros

    # T is small & static -> fully unrolled; every slice below is static.
    for t in range(T):
        # layer 1: only the h1-dependent matmul sits on the recurrence chain.
        g1 = (jnp.dot(h1, whh1, preferred_element_type=jnp.float32)
              + xp[t * B:(t + 1) * B, :])
        h1, c1 = gates_to_hc(g1, c1)
        # layer 2: two separate matmuls (no per-step lane concat); only h2 @ W_hh2
        # is on the layer-2 chain.
        g2 = (jnp.dot(h1, wih2, preferred_element_type=jnp.float32)
              + jnp.dot(h2, whh2, preferred_element_type=jnp.float32)
              + b2)
        h2, c2 = gates_to_hc(g2, c2)

    # Linear(20, 1) on the last timestep's h2: VPU multiply + lane reduction.
    # wfc padded lanes are zero, so the padded h2 lanes contribute nothing.
    out_ref[...] = (jnp.sum(h2 * wfc_ref[...], axis=-1, keepdims=True)
                    + bfc_ref[...])


@jax.jit
def lstm_model_forward(x, kp):
    """x: (B, T, F) batch-first float32 -> (B, 1) float32 (PyTorch-equivalent)."""
    B, T, F = x.shape
    HP = HIDDEN_PAD
    G = 4 * HP

    # Layout plumbing only (tiny): time-major rows so xp[t*B:(t+1)*B] is a static slice.
    x_tb = jnp.transpose(x.astype(jnp.float32), (1, 0, 2)).reshape(T * B, F)

    flops = 2 * T * B * F * G + 3 * 2 * T * B * HP * G
    transcendentals = 2 * T * B * 5 * HP
    bytes_accessed = 4 * (T * B * F + F * G + 3 * HP * G + 2 * G + HP + 1 + B)

    vmem_spec = pl.BlockSpec(memory_space=pltpu.MemorySpace.VMEM)

    return pl.pallas_call(
        _lstm_fc_kernel,
        out_shape=jax.ShapeDtypeStruct((B, 1), jnp.float32),
        in_specs=[vmem_spec] * 9,
        out_specs=vmem_spec,
        cost_estimate=pl.CostEstimate(flops=flops,
                                      transcendentals=transcendentals,
                                      bytes_accessed=bytes_accessed),
        # Tiny working set: every operand is a single full VMEM block; no grid,
        # no tiling, no pipelining needed on v5e / v6e / v7x.
    )(x_tb,
      kp["wih1"], kp["whh1"], kp["b1"],
      kp["wih2"], kp["whh2"], kp["b2"],
      kp["wfc"], kp["bfc"])


# ----------------------------------------------------------------------------
# Parameter construction: PyTorch-layout init + conversion to the fused kernel
# layout (transpose to (in, 4H), gate permutation (i,f,g,o)->(i,f,o,g), and
# ZERO padding of the hidden dim 20 -> 32 so 4H' = 128 lanes).
# ----------------------------------------------------------------------------
def init_torch_params(key, features=FEATURES, hidden=HIDDEN):
    """PyTorch-style init: U(-1/sqrt(H), 1/sqrt(H)), PyTorch tensor layouts."""
    bound = 1.0 / np.sqrt(hidden)
    keys = jax.random.split(key, 10)

    def u(kk, shape):
        return jax.random.uniform(kk, shape, jnp.float32, -bound, bound)

    return {
        "lstm1": {"w_ih": u(keys[0], (4 * hidden, features)),
                  "w_hh": u(keys[1], (4 * hidden, hidden)),
                  "b_ih": u(keys[2], (4 * hidden,)),
                  "b_hh": u(keys[3], (4 * hidden,))},
        "lstm2": {"w_ih": u(keys[4], (4 * hidden, hidden)),
                  "w_hh": u(keys[5], (4 * hidden, hidden)),
                  "b_ih": u(keys[6], (4 * hidden,)),
                  "b_hh": u(keys[7], (4 * hidden,))},
        "fc": {"w": u(keys[8], (1, hidden)),      # nn.Linear(20, 1).weight
               "b": u(keys[9], (1,))},            # nn.Linear(20, 1).bias
    }


def convert_params(tp, hidden=HIDDEN, hp=HIDDEN_PAD):
    """PyTorch layout -> kernel layout (gate perm + transpose + zero padding)."""
    perm = _GATE_PERM  # np.array index (list indexing is rejected by jnp)

    def to_cols(w, pad_rows):
        # torch (4H, in) -> kernel (in + pad_rows, 4*hp); extra rows/cols are ZERO.
        in_dim = w.shape[1]
        g4 = w.reshape(4, hidden, in_dim)[perm]               # (4, H, in)
        g4 = jnp.transpose(g4, (2, 0, 1))                     # (in, 4, H)
        g4 = jnp.pad(g4, ((0, pad_rows), (0, 0), (0, hp - hidden)))
        return g4.reshape(in_dim + pad_rows, 4 * hp)

    def fused_bias(lstm):
        b = (lstm["b_ih"] + lstm["b_hh"]).reshape(4, hidden)[perm]   # (4, H)
        b = jnp.pad(b, ((0, 0), (0, hp - hidden)))                   # padded lanes = 0
        return b.reshape(1, 4 * hp)

    l1, l2 = tp["lstm1"], tp["lstm2"]
    return {
        "wih1": to_cols(l1["w_ih"], 0),                # (F,  4HP)
        "whh1": to_cols(l1["w_hh"], hp - hidden),      # (HP, 4HP)
        "b1":   fused_bias(l1),                        # (1,  4HP)
        "wih2": to_cols(l2["w_ih"], hp - hidden),      # (HP, 4HP)
        "whh2": to_cols(l2["w_hh"], hp - hidden),      # (HP, 4HP)
        "b2":   fused_bias(l2),                        # (1,  4HP)
        "wfc":  jnp.pad(tp["fc"]["w"], ((0, 0), (0, hp - hidden))),  # (1, HP), pad = 0
        "bfc":  tp["fc"]["b"].reshape(1, 1),           # (1, 1)
    }


def reference_forward(x, tp):
    """Pure-JAX re-implementation of the PyTorch forward (verification only)."""
    H = tp["lstm1"]["w_hh"].shape[1]
    B, T, _ = x.shape

    def cell(p, x_t, h, c):
        g = x_t @ p["w_ih"].T + h @ p["w_hh"].T + p["b_ih"] + p["b_hh"]
        i = jax.nn.sigmoid(g[:, 0 * H:1 * H])
        f = jax.nn.sigmoid(g[:, 1 * H:2 * H])
        gg = jnp.tanh(g[:, 2 * H:3 * H])
        o = jax.nn.sigmoid(g[:, 3 * H:4 * H])
        c_new = f * c + i * gg
        return o * jnp.tanh(c_new), c_new

    z = jnp.zeros((B, H), jnp.float32)
    h1 = c1 = h2 = c2 = z
    for t in range(T):
        h1, c1 = cell(tp["lstm1"], x[:, t, :], h1, c1)
        h2, c2 = cell(tp["lstm2"], h1, h2, c2)
    return h2 @ tp["fc"]["w"].T + tp["fc"]["b"]


if __name__ == "__main__":
    key = jax.random.PRNGKey(0)
    k_x, k_p = jax.random.split(key)

    B, T, F = 2, 8, FEATURES
    x = jax.random.normal(k_x, (B, T, F), jnp.float32)

    torch_params = init_torch_params(k_p)
    kernel_params = convert_params(torch_params)

    out = jax.block_until_ready(lstm_model_forward(x, kernel_params))
    ref = reference_forward(x, torch_params)

    assert out.shape == (B, 1), out.shape
    assert jnp.allclose(out, ref, atol=1e-4, rtol=1e-4), (out, ref)
    print("KERNEL_OK")
</pallas_src>

<mosaic_0001>
module attributes {stable_mosaic.version = 11 : i64} {
  func.func @_lstm_fc_kernel(%arg0: memref<16x4xf32, #tpu.memory_space<vmem>>, %arg1: memref<4x128xf32, #tpu.memory_space<vmem>>, %arg2: memref<32x128xf32, #tpu.memory_space<vmem>>, %arg3: memref<1x128xf32, #tpu.memory_space<vmem>>, %arg4: memref<32x128xf32, #tpu.memory_space<vmem>>, %arg5: memref<32x128xf32, #tpu.memory_space<vmem>>, %arg6: memref<1x128xf32, #tpu.memory_space<vmem>>, %arg7: memref<1x32xf32, #tpu.memory_space<vmem>>, %arg8: memref<1x1xf32, #tpu.memory_space<vmem>>, %arg9: memref<2x1xf32, #tpu.memory_space<vmem>>) attributes {dimension_semantics = [], scalar_prefetch = 0 : i64, scratch_operands = 0 : i64, tpu.core_type = #tpu.core_type<tc>} {
    %c0 = arith.constant 0 : index
    %c0_0 = arith.constant 0 : index
    %0 = vector.load %arg0[%c0, %c0_0] : memref<16x4xf32, #tpu.memory_space<vmem>>, vector<16x4xf32>
    %c0_1 = arith.constant 0 : index
    %c0_2 = arith.constant 0 : index
    %1 = vector.load %arg1[%c0_1, %c0_2] : memref<4x128xf32, #tpu.memory_space<vmem>>, vector<4x128xf32>
    %cst = arith.constant dense<0.000000e+00> : vector<16x128xf32>
    %2 = tpu.matmul %0, %1, %cst {dimension_numbers = #tpu.dot_dimension_numbers<[1], [0], [0], [1], [0, 0, 1, 1], [], []>} : vector<16x4xf32>, vector<4x128xf32>, vector<16x128xf32> -> vector<16x128xf32>
    %c0_3 = arith.constant 0 : index
    %c0_4 = arith.constant 0 : index
    %3 = vector.load %arg3[%c0_3, %c0_4] : memref<1x128xf32, #tpu.memory_space<vmem>>, vector<1x128xf32>
    %4 = vector.shape_cast %3 : vector<1x128xf32> to vector<1x128xf32>
    %5 = vector.broadcast %4 : vector<1x128xf32> to vector<16x128xf32>
    %6 = arith.addf %2, %5 : vector<16x128xf32>
    %c0_5 = arith.constant 0 : index
    %c0_6 = arith.constant 0 : index
    %7 = vector.load %arg2[%c0_5, %c0_6] : memref<32x128xf32, #tpu.memory_space<vmem>>, vector<32x128xf32>
    %c0_7 = arith.constant 0 : index
    %c0_8 = arith.constant 0 : index
    %8 = vector.load %arg4[%c0_7, %c0_8] : memref<32x128xf32, #tpu.memory_space<vmem>>, vector<32x128xf32>
    %c0_9 = arith.constant 0 : index
    %c0_10 = arith.constant 0 : index
    %9 = vector.load %arg5[%c0_9, %c0_10] : memref<32x128xf32, #tpu.memory_space<vmem>>, vector<32x128xf32>
    %c0_11 = arith.constant 0 : index
    %c0_12 = arith.constant 0 : index
    %10 = vector.load %arg6[%c0_11, %c0_12] : memref<1x128xf32, #tpu.memory_space<vmem>>, vector<1x128xf32>
    %11 = vector.shape_cast %10 : vector<1x128xf32> to vector<1x128xf32>
    %12 = vector.broadcast %11 : vector<1x128xf32> to vector<2x128xf32>
    %cst_13 = arith.constant 0.000000e+00 : f32
    %13 = vector.broadcast %cst_13 : f32 to vector<2x32xf32>
    %cst_14 = arith.constant dense<0.000000e+00> : vector<2x128xf32>
    %14 = tpu.matmul %13, %7, %cst_14 {dimension_numbers = #tpu.dot_dimension_numbers<[1], [0], [0], [1], [0, 0, 1, 1], [], []>} : vector<2x32xf32>, vector<32x128xf32>, vector<2x128xf32> -> vector<2x128xf32>
    %15 = vector.extract_strided_slice %6 {offsets = [0, 0], sizes = [2, 128], strides = [1, 1]} : vector<16x128xf32> to vector<2x128xf32>
    %16 = arith.addf %14, %15 : vector<2x128xf32>
    %17 = vector.extract_strided_slice %16 {offsets = [0, 0], sizes = [2, 96], strides = [1, 1]} : vector<2x128xf32> to vector<2x96xf32>
    %18 = arith.negf %17 : vector<2x96xf32>
    %19 = math.exp %18 : vector<2x96xf32>
    %cst_15 = arith.constant 1.000000e+00 : f32
    %20 = vector.broadcast %cst_15 : f32 to vector<2x96xf32>
    %21 = arith.addf %20, %19 : vector<2x96xf32>
    %22 = arith.divf %20, %21 : vector<2x96xf32>
    %23 = vector.extract_strided_slice %22 {offsets = [0, 0], sizes = [2, 32], strides = [1, 1]} : vector<2x96xf32> to vector<2x32xf32>
    %24 = vector.extract_strided_slice %22 {offsets = [0, 32], sizes = [2, 32], strides = [1, 1]} : vector<2x96xf32> to vector<2x32xf32>
    %25 = vector.extract_strided_slice %22 {offsets = [0, 64], sizes = [2, 32], strides = [1, 1]} : vector<2x96xf32> to vector<2x32xf32>
    %26 = vector.extract_strided_slice %16 {offsets = [0, 96], sizes = [2, 32], strides = [1, 1]} : vector<2x128xf32> to vector<2x32xf32>
    %27 = math.tanh %26 : vector<2x32xf32>
    %28 = arith.mulf %24, %13 : vector<2x32xf32>
    %29 = arith.mulf %23, %27 : vector<2x32xf32>
    %30 = arith.addf %28, %29 : vector<2x32xf32>
    %31 = math.tanh %30 : vector<2x32xf32>
    %32 = arith.mulf %25, %31 : vector<2x32xf32>
    %cst_16 = arith.constant dense<0.000000e+00> : vector<2x128xf32>
    %33 = tpu.matmul %32, %8, %cst_16 {dimension_numbers = #tpu.dot_dimension_numbers<[1], [0], [0], [1], [0, 0, 1, 1], [], []>} : vector<2x32xf32>, vector<32x128xf32>, vector<2x128xf32> -> vector<2x128xf32>
    %cst_17 = arith.constant dense<0.000000e+00> : vector<2x128xf32>
    %34 = tpu.matmul %13, %9, %cst_17 {dimension_numbers = #tpu.dot_dimension_numbers<[1], [0], [0], [1], [0, 0, 1, 1], [], []>} : vector<2x32xf32>, vector<32x128xf32>, vector<2x128xf32> -> vector<2x128xf32>
    %35 = arith.addf %33, %34 : vector<2x128xf32>
    %36 = arith.addf %35, %12 : vector<2x128xf32>
    %37 = vector.extract_strided_slice %36 {offsets = [0, 0], sizes = [2, 96], strides = [1, 1]} : vector<2x128xf32> to vector<2x96xf32>
    %38 = arith.negf %37 : vector<2x96xf32>
    %39 = math.exp %38 : vector<2x96xf32>
    %cst_18 = arith.constant 1.000000e+00 : f32
    %40 = vector.broadcast %cst_18 : f32 to vector<2x96xf32>
    %41 = arith.addf %40, %39 : vector<2x96xf32>
    %42 = arith.divf %40, %41 : vector<2x96xf32>
    %43 = vector.extract_strided_slice %42 {offsets = [0, 0], sizes = [2, 32], strides = [1, 1]} : vector<2x96xf32> to vector<2x32xf32>
    %44 = vector.extract_strided_slice %42 {offsets = [0, 32], sizes = [2, 32], strides = [1, 1]} : vector<2x96xf32> to vector<2x32xf32>
    %45 = vector.extract_strided_slice %42 {offsets = [0, 64], sizes = [2, 32], strides = [1, 1]} : vector<2x96xf32> to vector<2x32xf32>
    %46 = vector.extract_strided_slice %36 {offsets = [0, 96], sizes = [2, 32], strides = [1, 1]} : vector<2x128xf32> to vector<2x32xf32>
    %47 = math.tanh %46 : vector<2x32xf32>
    %48 = arith.mulf %44, %13 : vector<2x32xf32>
    %49 = arith.mulf %43, %47 : vector<2x32xf32>
    %50 = arith.addf %48, %49 : vector<2x32xf32>
    %51 = math.tanh %50 : vector<2x32xf32>
    %52 = arith.mulf %45, %51 : vector<2x32xf32>
    %cst_19 = arith.constant dense<0.000000e+00> : vector<2x128xf32>
    %53 = tpu.matmul %32, %7, %cst_19 {dimension_numbers = #tpu.dot_dimension_numbers<[1], [0], [0], [1], [0, 0, 1, 1], [], []>} : vector<2x32xf32>, vector<32x128xf32>, vector<2x128xf32> -> vector<2x128xf32>
    %54 = vector.extract_strided_slice %6 {offsets = [2, 0], sizes = [2, 128], strides = [1, 1]} : vector<16x128xf32> to vector<2x128xf32>
    %55 = arith.addf %53, %54 : vector<2x128xf32>
    %56 = vector.extract_strided_slice %55 {offsets = [0, 0], sizes = [2, 96], strides = [1, 1]} : vector<2x128xf32> to vector<2x96xf32>
    %57 = arith.negf %56 : vector<2x96xf32>
    %58 = math.exp %57 : vector<2x96xf32>
    %cst_20 = arith.constant 1.000000e+00 : f32
    %59 = vector.broadcast %cst_20 : f32 to vector<2x96xf32>
    %60 = arith.addf %59, %58 : vector<2x96xf32>
    %61 = arith.divf %59, %60 : vector<2x96xf32>
    %62 = vector.extract_strided_slice %61 {offsets = [0, 0], sizes = [2, 32], strides = [1, 1]} : vector<2x96xf32> to vector<2x32xf32>
    %63 = vector.extract_strided_slice %61 {offsets = [0, 32], sizes = [2, 32], strides = [1, 1]} : vector<2x96xf32> to vector<2x32xf32>
    %64 = vector.extract_strided_slice %61 {offsets = [0, 64], sizes = [2, 32], strides = [1, 1]} : vector<2x96xf32> to vector<2x32xf32>
    %65 = vector.extract_strided_slice %55 {offsets = [0, 96], sizes = [2, 32], strides = [1, 1]} : vector<2x128xf32> to vector<2x32xf32>
    %66 = math.tanh %65 : vector<2x32xf32>
    %67 = arith.mulf %63, %30 : vector<2x32xf32>
    %68 = arith.mulf %62, %66 : vector<2x32xf32>
    %69 = arith.addf %67, %68 : vector<2x32xf32>
    %70 = math.tanh %69 : vector<2x32xf32>
    %71 = arith.mulf %64, %70 : vector<2x32xf32>
    %cst_21 = arith.constant dense<0.000000e+00> : vector<2x128xf32>
    %72 = tpu.matmul %71, %8, %cst_21 {dimension_numbers = #tpu.dot_dimension_numbers<[1], [0], [0], [1], [0, 0, 1, 1], [], []>} : vector<2x32xf32>, vector<32x128xf32>, vector<2x128xf32> -> vector<2x128xf32>
    %cst_22 = arith.constant dense<0.000000e+00> : vector<2x128xf32>
    %73 = tpu.matmul %52, %9, %cst_22 {dimension_numbers = #tpu.dot_dimension_numbers<[1], [0], [0], [1], [0, 0, 1, 1], [], []>} : vector<2x32xf32>, vector<32x128xf32>, vector<2x128xf32> -> vector<2x128xf32>
    %74 = arith.addf %72, %73 : vector<2x128xf32>
    %75 = arith.addf %74, %12 : vector<2x128xf32>
    %76 = vector.extract_strided_slice %75 {offsets = [0, 0], sizes = [2, 96], strides = [1, 1]} : vector<2x128xf32> to vector<2x96xf32>
    %77 = arith.negf %76 : vector<2x96xf32>
    %78 = math.exp %77 : vector<2x96xf32>
    %cst_23 = arith.constant 1.000000e+00 : f32
    %79 = vector.broadcast %cst_23 : f32 to vector<2x96xf32>
    %80 = arith.addf %79, %78 : vector<2x96xf32>
    %81 = arith.divf %79, %80 : vector<2x96xf32>
    %82 = vector.extract_strided_slice %81 {offsets = [0, 0], sizes = [2, 32], strides = [1, 1]} : vector<2x96xf32> to vector<2x32xf32>
    %83 = vector.extract_strided_slice %81 {offsets = [0, 32], sizes = [2, 32], strides = [1, 1]} : vector<2x96xf32> to vector<2x32xf32>
    %84 = vector.extract_strided_slice %81 {offsets = [0, 64], sizes = [2, 32], strides = [1, 1]} : vector<2x96xf32> to vector<2x32xf32>
    %85 = vector.extract_strided_slice %75 {offsets = [0, 96], sizes = [2, 32], strides = [1, 1]} : vector<2x128xf32> to vector<2x32xf32>
    %86 = math.tanh %85 : vector<2x32xf32>
    %87 = arith.mulf %83, %50 : vector<2x32xf32>
    %88 = arith.mulf %82, %86 : vector<2x32xf32>
    %89 = arith.addf %87, %88 : vector<2x32xf32>
    %90 = math.tanh %89 : vector<2x32xf32>
    %91 = arith.mulf %84, %90 : vector<2x32xf32>
    %cst_24 = arith.constant dense<0.000000e+00> : vector<2x128xf32>
    %92 = tpu.matmul %71, %7, %cst_24 {dimension_numbers = #tpu.dot_dimension_numbers<[1], [0], [0], [1], [0, 0, 1, 1], [], []>} : vector<2x32xf32>, vector<32x128xf32>, vector<2x128xf32> -> vector<2x128xf32>
    %93 = vector.extract_strided_slice %6 {offsets = [4, 0], sizes = [2, 128], strides = [1, 1]} : vector<16x128xf32> to vector<2x128xf32>
    %94 = arith.addf %92, %93 : vector<2x128xf32>
    %95 = vector.extract_strided_slice %94 {offsets = [0, 0], sizes = [2, 96], strides = [1, 1]} : vector<2x128xf32> to vector<2x96xf32>
    %96 = arith.negf %95 : vector<2x96xf32>
    %97 = math.exp %96 : vector<2x96xf32>
    %cst_25 = arith.constant 1.000000e+00 : f32
    %98 = vector.broadcast %cst_25 : f32 to vector<2x96xf32>
    %99 = arith.addf %98, %97 : vector<2x96xf32>
    %100 = arith.divf %98, %99 : vector<2x96xf32>
    %101 = vector.extract_strided_slice %100 {offsets = [0, 0], sizes = [2, 32], strides = [1, 1]} : vector<2x96xf32> to vector<2x32xf32>
    %102 = vector.extract_strided_slice %100 {offsets = [0, 32], sizes = [2, 32], strides = [1, 1]} : vector<2x96xf32> to vector<2x32xf32>
    %103 = vector.extract_strided_slice %100 {offsets = [0, 64], sizes = [2, 32], strides = [1, 1]} : vector<2x96xf32> to vector<2x32xf32>
    %104 = vector.extract_strided_slice %94 {offsets = [0, 96], sizes = [2, 32], strides = [1, 1]} : vector<2x128xf32> to vector<2x32xf32>
    %105 = math.tanh %104 : vector<2x32xf32>
    %106 = arith.mulf %102, %69 : vector<2x32xf32>
    %107 = arith.mulf %101, %105 : vector<2x32xf32>
    %108 = arith.addf %106, %107 : vector<2x32xf32>
    %109 = math.tanh %108 : vector<2x32xf32>
    %110 = arith.mulf %103, %109 : vector<2x32xf32>
    %cst_26 = arith.constant dense<0.000000e+00> : vector<2x128xf32>
    %111 = tpu.matmul %110, %8, %cst_26 {dimension_numbers = #tpu.dot_dimension_numbers<[1], [0], [0], [1], [0, 0, 1, 1], [], []>} : vector<2x32xf32>, vector<32x128xf32>, vector<2x128xf32> -> vector<2x128xf32>
    %cst_27 = arith.constant dense<0.000000e+00> : vector<2x128xf32>
    %112 = tpu.matmul %91, %9, %cst_27 {dimension_numbers = #tpu.dot_dimension_numbers<[1], [0], [0], [1], [0, 0, 1, 1], [], []>} : vector<2x32xf32>, vector<32x128xf32>, vector<2x128xf32> -> vector<2x128xf32>
    %113 = arith.addf %111, %112 : vector<2x128xf32>
    %114 = arith.addf %113, %12 : vector<2x128xf32>
    %115 = vector.extract_strided_slice %114 {offsets = [0, 0], sizes = [2, 96], strides = [1, 1]} : vector<2x128xf32> to vector<2x96xf32>
    %116 = arith.negf %115 : vector<2x96xf32>
    %117 = math.exp %116 : vector<2x96xf32>
    %cst_28 = arith.constant 1.000000e+00 : f32
    %118 = vector.broadcast %cst_28 : f32 to vector<2x96xf32>
    %119 = arith.addf %118, %117 : vector<2x96xf32>
    %120 = arith.divf %118, %119 : vector<2x96xf32>
    %121 = vector.extract_strided_slice %120 {offsets = [0, 0], sizes = [2, 32], strides = [1, 1]} : vector<2x96xf32> to vector<2x32xf32>
    %122 = vector.extract_strided_slice %120 {offsets = [0, 32], sizes = [2, 32], strides = [1, 1]} : vector<2x96xf32> to vector<2x32xf32>
    %123 = vector.extract_strided_slice %120 {offsets = [0, 64], sizes = [2, 32], strides = [1, 1]} : vector<2x96xf32> to vector<2x32xf32>
    %124 = vector.extract_strided_slice %114 {offsets = [0, 96], sizes = [2, 32], strides = [1, 1]} : vector<2x128xf32> to vector<2x32xf32>
    %125 = math.tanh %124 : vector<2x32xf32>
    %126 = arith.mulf %122, %89 : vector<2x32xf32>
    %127 = arith.mulf %121, %125 : vector<2x32xf32>
    %128 = arith.addf %126, %127 : vector<2x32xf32>
    %129 = math.tanh %128 : vector<2x32xf32>
    %130 = arith.mulf %123, %129 : vector<2x32xf32>
    %cst_29 = arith.constant dense<0.000000e+00> : vector<2x128xf32>
    %131 = tpu.matmul %110, %7, %cst_29 {dimension_numbers = #tpu.dot_dimension_numbers<[1], [0], [0], [1], [0, 0, 1, 1], [], []>} : vector<2x32xf32>, vector<32x128xf32>, vector<2x128xf32> -> vector<2x128xf32>
    %132 = vector.extract_strided_slice %6 {offsets = [6, 0], sizes = [2, 128], strides = [1, 1]} : vector<16x128xf32> to vector<2x128xf32>
    %133 = arith.addf %131, %132 : vector<2x128xf32>
    %134 = vector.extract_strided_slice %133 {offsets = [0, 0], sizes = [2, 96], strides = [1, 1]} : vector<2x128xf32> to vector<2x96xf32>
    %135 = arith.negf %134 : vector<2x96xf32>
    %136 = math.exp %135 : vector<2x96xf32>
    %cst_30 = arith.constant 1.000000e+00 : f32
    %137 = vector.broadcast %cst_30 : f32 to vector<2x96xf32>
    %138 = arith.addf %137, %136 : vector<2x96xf32>
    %139 = arith.divf %137, %138 : vector<2x96xf32>
    %140 = vector.extract_strided_slice %139 {offsets = [0, 0], sizes = [2, 32], strides = [1, 1]} : vector<2x96xf32> to vector<2x32xf32>
    %141 = vector.extract_strided_slice %139 {offsets = [0, 32], sizes = [2, 32], strides = [1, 1]} : vector<2x96xf32> to vector<2x32xf32>
    %142 = vector.extract_strided_slice %139 {offsets = [0, 64], sizes = [2, 32], strides = [1, 1]} : vector<2x96xf32> to vector<2x32xf32>
    %143 = vector.extract_strided_slice %133 {offsets = [0, 96], sizes = [2, 32], strides = [1, 1]} : vector<2x128xf32> to vector<2x32xf32>
    %144 = math.tanh %143 : vector<2x32xf32>
    %145 = arith.mulf %141, %108 : vector<2x32xf32>
    %146 = arith.mulf %140, %144 : vector<2x32xf32>
    %147 = arith.addf %145, %146 : vector<2x32xf32>
    %148 = math.tanh %147 : vector<2x32xf32>
    %149 = arith.mulf %142, %148 : vector<2x32xf32>
    %cst_31 = arith.constant dense<0.000000e+00> : vector<2x128xf32>
    %150 = tpu.matmul %149, %8, %cst_31 {dimension_numbers = #tpu.dot_dimension_numbers<[1], [0], [0], [1], [0, 0, 1, 1], [], []>} : vector<2x32xf32>, vector<32x128xf32>, vector<2x128xf32> -> vector<2x128xf32>
    %cst_32 = arith.constant dense<0.000000e+00> : vector<2x128xf32>
    %151 = tpu.matmul %130, %9, %cst_32 {dimension_numbers = #tpu.dot_dimension_numbers<[1], [0], [0], [1], [0, 0, 1, 1], [], []>} : vector<2x32xf32>, vector<32x128xf32>, vector<2x128xf32> -> vector<2x128xf32>
    %152 = arith.addf %150, %151 : vector<2x128xf32>
    %153 = arith.addf %152, %12 : vector<2x128xf32>
    %154 = vector.extract_strided_slice %153 {offsets = [0, 0], sizes = [2, 96], strides = [1, 1]} : vector<2x128xf32> to vector<2x96xf32>
    %155 = arith.negf %154 : vector<2x96xf32>
    %156 = math.exp %155 : vector<2x96xf32>
    %cst_33 = arith.constant 1.000000e+00 : f32
    %157 = vector.broadcast %cst_33 : f32 to vector<2x96xf32>
    %158 = arith.addf %157, %156 : vector<2x96xf32>
    %159 = arith.divf %157, %158 : vector<2x96xf32>
    %160 = vector.extract_strided_slice %159 {offsets = [0, 0], sizes = [2, 32], strides = [1, 1]} : vector<2x96xf32> to vector<2x32xf32>
    %161 = vector.extract_strided_slice %159 {offsets = [0, 32], sizes = [2, 32], strides = [1, 1]} : vector<2x96xf32> to vector<2x32xf32>
    %162 = vector.extract_strided_slice %159 {offsets = [0, 64], sizes = [2, 32], strides = [1, 1]} : vector<2x96xf32> to vector<2x32xf32>
    %163 = vector.extract_strided_slice %153 {offsets = [0, 96], sizes = [2, 32], strides = [1, 1]} : vector<2x128xf32> to vector<2x32xf32>
    %164 = math.tanh %163 : vector<2x32xf32>
    %165 = arith.mulf %161, %128 : vector<2x32xf32>
    %166 = arith.mulf %160, %164 : vector<2x32xf32>
    %167 = arith.addf %165, %166 : vector<2x32xf32>
    %168 = math.tanh %167 : vector<2x32xf32>
    %169 = arith.mulf %162, %168 : vector<2x32xf32>
    %cst_34 = arith.constant dense<0.000000e+00> : vector<2x128xf32>
    %170 = tpu.matmul %149, %7, %cst_34 {dimension_numbers = #tpu.dot_dimension_numbers<[1], [0], [0], [1], [0, 0, 1, 1], [], []>} : vector<2x32xf32>, vector<32x128xf32>, vector<2x128xf32> -> vector<2x128xf32>
    %171 = vector.extract_strided_slice %6 {offsets = [8, 0], sizes = [2, 128], strides = [1, 1]} : vector<16x128xf32> to vector<2x128xf32>
    %172 = arith.addf %170, %171 : vector<2x128xf32>
    %173 = vector.extract_strided_slice %172 {offsets = [0, 0], sizes = [2, 96], strides = [1, 1]} : vector<2x128xf32> to vector<2x96xf32>
    %174 = arith.negf %173 : vector<2x96xf32>
    %175 = math.exp %174 : vector<2x96xf32>
    %cst_35 = arith.constant 1.000000e+00 : f32
    %176 = vector.broadcast %cst_35 : f32 to vector<2x96xf32>
    %177 = arith.addf %176, %175 : vector<2x96xf32>
    %178 = arith.divf %176, %177 : vector<2x96xf32>
    %179 = vector.extract_strided_slice %178 {offsets = [0, 0], sizes = [2, 32], strides = [1, 1]} : vector<2x96xf32> to vector<2x32xf32>
    %180 = vector.extract_strided_slice %178 {offsets = [0, 32], sizes = [2, 32], strides = [1, 1]} : vector<2x96xf32> to vector<2x32xf32>
    %181 = vector.extract_strided_slice %178 {offsets = [0, 64], sizes = [2, 32], strides = [1, 1]} : vector<2x96xf32> to vector<2x32xf32>
    %182 = vector.extract_strided_slice %172 {offsets = [0, 96], sizes = [2, 32], strides = [1, 1]} : vector<2x128xf32> to vector<2x32xf32>
    %183 = math.tanh %182 : vector<2x32xf32>
    %184 = arith.mulf %180, %147 : vector<2x32xf32>
    %185 = arith.mulf %179, %183 : vector<2x32xf32>
    %186 = arith.addf %184, %185 : vector<2x32xf32>
    %187 = math.tanh %186 : vector<2x32xf32>
    %188 = arith.mulf %181, %187 : vector<2x32xf32>
    %cst_36 = arith.constant dense<0.000000e+00> : vector<2x128xf32>
    %189 = tpu.matmul %188, %8, %cst_36 {dimension_numbers = #tpu.dot_dimension_numbers<[1], [0], [0], [1], [0, 0, 1, 1], [], []>} : vector<2x32xf32>, vector<32x128xf32>, vector<2x128xf32> -> vector<2x128xf32>
    %cst_37 = arith.constant dense<0.000000e+00> : vector<2x128xf32>
    %190 = tpu.matmul %169, %9, %cst_37 {dimension_numbers = #tpu.dot_dimension_numbers<[1], [0], [0], [1], [0, 0, 1, 1], [], []>} : vector<2x32xf32>, vector<32x128xf32>, vector<2x128xf32> -> vector<2x128xf32>
    %191 = arith.addf %189, %190 : vector<2x128xf32>
    %192 = arith.addf %191, %12 : vector<2x128xf32>
    %193 = vector.extract_strided_slice %192 {offsets = [0, 0], sizes = [2, 96], strides = [1, 1]} : vector<2x128xf32> to vector<2x96xf32>
    %194 = arith.negf %193 : vector<2x96xf32>
    %195 = math.exp %194 : vector<2x96xf32>
    %cst_38 = arith.constant 1.000000e+00 : f32
    %196 = vector.broadcast %cst_38 : f32 to vector<2x96xf32>
    %197 = arith.addf %196, %195 : vector<2x96xf32>
    %198 = arith.divf %196, %197 : vector<2x96xf32>
    %199 = vector.extract_strided_slice %198 {offsets = [0, 0], sizes = [2, 32], strides = [1, 1]} : vector<2x96xf32> to vector<2x32xf32>
    %200 = vector.extract_strided_slice %198 {offsets = [0, 32], sizes = [2, 32], strides = [1, 1]} : vector<2x96xf32> to vector<2x32xf32>
    %201 = vector.extract_strided_slice %198 {offsets = [0, 64], sizes = [2, 32], strides = [1, 1]} : vector<2x96xf32> to vector<2x32xf32>
    %202 = vector.extract_strided_slice %192 {offsets = [0, 96], sizes = [2, 32], strides = [1, 1]} : vector<2x128xf32> to vector<2x32xf32>
    %203 = math.tanh %202 : vector<2x32xf32>
    %204 = arith.mulf %200, %167 : vector<2x32xf32>
    %205 = arith.mulf %199, %203 : vector<2x32xf32>
    %206 = arith.addf %204, %205 : vector<2x32xf32>
    %207 = math.tanh %206 : vector<2x32xf32>
    %208 = arith.mulf %201, %207 : vector<2x32xf32>
    %cst_39 = arith.constant dense<0.000000e+00> : vector<2x128xf32>
    %209 = tpu.matmul %188, %7, %cst_39 {dimension_numbers = #tpu.dot_dimension_numbers<[1], [0], [0], [1], [0, 0, 1, 1], [], []>} : vector<2x32xf32>, vector<32x128xf32>, vector<2x128xf32> -> vector<2x128xf32>
    %210 = vector.extract_strided_slice %6 {offsets = [10, 0], sizes = [2, 128], strides = [1, 1]} : vector<16x128xf32> to vector<2x128xf32>
    %211 = arith.addf %209, %210 : vector<2x128xf32>
    %212 = vector.extract_strided_slice %211 {offsets = [0, 0], sizes = [2, 96], strides = [1, 1]} : vector<2x128xf32> to vector<2x96xf32>
    %213 = arith.negf %212 : vector<2x96xf32>
    %214 = math.exp %213 : vector<2x96xf32>
    %cst_40 = arith.constant 1.000000e+00 : f32
    %215 = vector.broadcast %cst_40 : f32 to vector<2x96xf32>
    %216 = arith.addf %215, %214 : vector<2x96xf32>
    %217 = arith.divf %215, %216 : vector<2x96xf32>
    %218 = vector.extract_strided_slice %217 {offsets = [0, 0], sizes = [2, 32], strides = [1, 1]} : vector<2x96xf32> to vector<2x32xf32>
    %219 = vector.extract_strided_slice %217 {offsets = [0, 32], sizes = [2, 32], strides = [1, 1]} : vector<2x96xf32> to vector<2x32xf32>
    %220 = vector.extract_strided_slice %217 {offsets = [0, 64], sizes = [2, 32], strides = [1, 1]} : vector<2x96xf32> to vector<2x32xf32>
    %221 = vector.extract_strided_slice %211 {offsets = [0, 96], sizes = [2, 32], strides = [1, 1]} : vector<2x128xf32> to vector<2x32xf32>
    %222 = math.tanh %221 : vector<2x32xf32>
    %223 = arith.mulf %219, %186 : vector<2x32xf32>
    %224 = arith.mulf %218, %222 : vector<2x32xf32>
    %225 = arith.addf %223, %224 : vector<2x32xf32>
    %226 = math.tanh %225 : vector<2x32xf32>
    %227 = arith.mulf %220, %226 : vector<2x32xf32>
    %cst_41 = arith.constant dense<0.000000e+00> : vector<2x128xf32>
    %228 = tpu.matmul %227, %8, %cst_41 {dimension_numbers = #tpu.dot_dimension_numbers<[1], [0], [0], [1], [0, 0, 1, 1], [], []>} : vector<2x32xf32>, vector<32x128xf32>, vector<2x128xf32> -> vector<2x128xf32>
    %cst_42 = arith.constant dense<0.000000e+00> : vector<2x128xf32>
    %229 = tpu.matmul %208, %9, %cst_42 {dimension_numbers = #tpu.dot_dimension_numbers<[1], [0], [0], [1], [0, 0, 1, 1], [], []>} : vector<2x32xf32>, vector<32x128xf32>, vector<2x128xf32> -> vector<2x128xf32>
    %230 = arith.addf %228, %229 : vector<2x128xf32>
    %231 = arith.addf %230, %12 : vector<2x128xf32>
    %232 = vector.extract_strided_slice %231 {offsets = [0, 0], sizes = [2, 96], strides = [1, 1]} : vector<2x128xf32> to vector<2x96xf32>
    %233 = arith.negf %232 : vector<2x96xf32>
    %234 = math.exp %233 : vector<2x96xf32>
    %cst_43 = arith.constant 1.000000e+00 : f32
    %235 = vector.broadcast %cst_43 : f32 to vector<2x96xf32>
    %236 = arith.addf %235, %234 : vector<2x96xf32>
    %237 = arith.divf %235, %236 : vector<2x96xf32>
    %238 = vector.extract_strided_slice %237 {offsets = [0, 0], sizes = [2, 32], strides = [1, 1]} : vector<2x96xf32> to vector<2x32xf32>
    %239 = vector.extract_strided_slice %237 {offsets = [0, 32], sizes = [2, 32], strides = [1, 1]} : vector<2x96xf32> to vector<2x32xf32>
    %240 = vector.extract_strided_slice %237 {offsets = [0, 64], sizes = [2, 32], strides = [1, 1]} : vector<2x96xf32> to vector<2x32xf32>
    %241 = vector.extract_strided_slice %231 {offsets = [0, 96], sizes = [2, 32], strides = [1, 1]} : vector<2x128xf32> to vector<2x32xf32>
    %242 = math.tanh %241 : vector<2x32xf32>
    %243 = arith.mulf %239, %206 : vector<2x32xf32>
    %244 = arith.mulf %238, %242 : vector<2x32xf32>
    %245 = arith.addf %243, %244 : vector<2x32xf32>
    %246 = math.tanh %245 : vector<2x32xf32>
    %247 = arith.mulf %240, %246 : vector<2x32xf32>
    %cst_44 = arith.constant dense<0.000000e+00> : vector<2x128xf32>
    %248 = tpu.matmul %227, %7, %cst_44 {dimension_numbers = #tpu.dot_dimension_numbers<[1], [0], [0], [1], [0, 0, 1, 1], [], []>} : vector<2x32xf32>, vector<32x128xf32>, vector<2x128xf32> -> vector<2x128xf32>
    %249 = vector.extract_strided_slice %6 {offsets = [12, 0], sizes = [2, 128], strides = [1, 1]} : vector<16x128xf32> to vector<2x128xf32>
    %250 = arith.addf %248, %249 : vector<2x128xf32>
    %251 = vector.extract_strided_slice %250 {offsets = [0, 0], sizes = [2, 96], strides = [1, 1]} : vector<2x128xf32> to vector<2x96xf32>
    %252 = arith.negf %251 : vector<2x96xf32>
    %253 = math.exp %252 : vector<2x96xf32>
    %cst_45 = arith.constant 1.000000e+00 : f32
    %254 = vector.broadcast %cst_45 : f32 to vector<2x96xf32>
    %255 = arith.addf %254, %253 : vector<2x96xf32>
    %256 = arith.divf %254, %255 : vector<2x96xf32>
    %257 = vector.extract_strided_slice %256 {offsets = [0, 0], sizes = [2, 32], strides = [1, 1]} : vector<2x96xf32> to vector<2x32xf32>
    %258 = vector.extract_strided_slice %256 {offsets = [0, 32], sizes = [2, 32], strides = [1, 1]} : vector<2x96xf32> to vector<2x32xf32>
    %259 = vector.extract_strided_slice %256 {offsets = [0, 64], sizes = [2, 32], strides = [1, 1]} : vector<2x96xf32> to vector<2x32xf32>
    %260 = vector.extract_strided_slice %250 {offsets = [0, 96], sizes = [2, 32], strides = [1, 1]} : vector<2x128xf32> to vector<2x32xf32>
    %261 = math.tanh %260 : vector<2x32xf32>
    %262 = arith.mulf %258, %225 : vector<2x32xf32>
    %263 = arith.mulf %257, %261 : vector<2x32xf32>
    %264 = arith.addf %262, %263 : vector<2x32xf32>
    %265 = math.tanh %264 : vector<2x32xf32>
    %266 = arith.mulf %259, %265 : vector<2x32xf32>
    %cst_46 = arith.constant dense<0.000000e+00> : vector<2x128xf32>
    %267 = tpu.matmul %266, %8, %cst_46 {dimension_numbers = #tpu.dot_dimension_numbers<[1], [0], [0], [1], [0, 0, 1, 1], [], []>} : vector<2x32xf32>, vector<32x128xf32>, vector<2x128xf32> -> vector<2x128xf32>
    %cst_47 = arith.constant dense<0.000000e+00> : vector<2x128xf32>
    %268 = tpu.matmul %247, %9, %cst_47 {dimension_numbers = #tpu.dot_dimension_numbers<[1], [0], [0], [1], [0, 0, 1, 1], [], []>} : vector<2x32xf32>, vector<32x128xf32>, vector<2x128xf32> -> vector<2x128xf32>
    %269 = arith.addf %267, %268 : vector<2x128xf32>
    %270 = arith.addf %269, %12 : vector<2x128xf32>
    %271 = vector.extract_strided_slice %270 {offsets = [0, 0], sizes = [2, 96], strides = [1, 1]} : vector<2x128xf32> to vector<2x96xf32>
    %272 = arith.negf %271 : vector<2x96xf32>
    %273 = math.exp %272 : vector<2x96xf32>
    %cst_48 = arith.constant 1.000000e+00 : f32
    %274 = vector.broadcast %cst_48 : f32 to vector<2x96xf32>
    %275 = arith.addf %274, %273 : vector<2x96xf32>
    %276 = arith.divf %274, %275 : vector<2x96xf32>
    %277 = vector.extract_strided_slice %276 {offsets = [0, 0], sizes = [2, 32], strides = [1, 1]} : vector<2x96xf32> to vector<2x32xf32>
    %278 = vector.extract_strided_slice %276 {offsets = [0, 32], sizes = [2, 32], strides = [1, 1]} : vector<2x96xf32> to vector<2x32xf32>
    %279 = vector.extract_strided_slice %276 {offsets = [0, 64], sizes = [2, 32], strides = [1, 1]} : vector<2x96xf32> to vector<2x32xf32>
    %280 = vector.extract_strided_slice %270 {offsets = [0, 96], sizes = [2, 32], strides = [1, 1]} : vector<2x128xf32> to vector<2x32xf32>
    %281 = math.tanh %280 : vector<2x32xf32>
    %282 = arith.mulf %278, %245 : vector<2x32xf32>
    %283 = arith.mulf %277, %281 : vector<2x32xf32>
    %284 = arith.addf %282, %283 : vector<2x32xf32>
    %285 = math.tanh %284 : vector<2x32xf32>
    %286 = arith.mulf %279, %285 : vector<2x32xf32>
    %cst_49 = arith.constant dense<0.000000e+00> : vector<2x128xf32>
    %287 = tpu.matmul %266, %7, %cst_49 {dimension_numbers = #tpu.dot_dimension_numbers<[1], [0], [0], [1], [0, 0, 1, 1], [], []>} : vector<2x32xf32>, vector<32x128xf32>, vector<2x128xf32> -> vector<2x128xf32>
    %288 = vector.extract_strided_slice %6 {offsets = [14, 0], sizes = [2, 128], strides = [1, 1]} : vector<16x128xf32> to vector<2x128xf32>
    %289 = arith.addf %287, %288 : vector<2x128xf32>
    %290 = vector.extract_strided_slice %289 {offsets = [0, 0], sizes = [2, 96], strides = [1, 1]} : vector<2x128xf32> to vector<2x96xf32>
    %291 = arith.negf %290 : vector<2x96xf32>
    %292 = math.exp %291 : vector<2x96xf32>
    %cst_50 = arith.constant 1.000000e+00 : f32
    %293 = vector.broadcast %cst_50 : f32 to vector<2x96xf32>
    %294 = arith.addf %293, %292 : vector<2x96xf32>
    %295 = arith.divf %293, %294 : vector<2x96xf32>
    %296 = vector.extract_strided_slice %295 {offsets = [0, 0], sizes = [2, 32], strides = [1, 1]} : vector<2x96xf32> to vector<2x32xf32>
    %297 = vector.extract_strided_slice %295 {offsets = [0, 32], sizes = [2, 32], strides = [1, 1]} : vector<2x96xf32> to vector<2x32xf32>
    %298 = vector.extract_strided_slice %295 {offsets = [0, 64], sizes = [2, 32], strides = [1, 1]} : vector<2x96xf32> to vector<2x32xf32>
    %299 = vector.extract_strided_slice %289 {offsets = [0, 96], sizes = [2, 32], strides = [1, 1]} : vector<2x128xf32> to vector<2x32xf32>
    %300 = math.tanh %299 : vector<2x32xf32>
    %301 = arith.mulf %297, %264 : vector<2x32xf32>
    %302 = arith.mulf %296, %300 : vector<2x32xf32>
    %303 = arith.addf %301, %302 : vector<2x32xf32>
    %304 = math.tanh %303 : vector<2x32xf32>
    %305 = arith.mulf %298, %304 : vector<2x32xf32>
    %cst_51 = arith.constant dense<0.000000e+00> : vector<2x128xf32>
    %306 = tpu.matmul %305, %8, %cst_51 {dimension_numbers = #tpu.dot_dimension_numbers<[1], [0], [0], [1], [0, 0, 1, 1], [], []>} : vector<2x32xf32>, vector<32x128xf32>, vector<2x128xf32> -> vector<2x128xf32>
    %cst_52 = arith.constant dense<0.000000e+00> : vector<2x128xf32>
    %307 = tpu.matmul %286, %9, %cst_52 {dimension_numbers = #tpu.dot_dimension_numbers<[1], [0], [0], [1], [0, 0, 1, 1], [], []>} : vector<2x32xf32>, vector<32x128xf32>, vector<2x128xf32> -> vector<2x128xf32>
    %308 = arith.addf %306, %307 : vector<2x128xf32>
    %309 = arith.addf %308, %12 : vector<2x128xf32>
    %310 = vector.extract_strided_slice %309 {offsets = [0, 0], sizes = [2, 96], strides = [1, 1]} : vector<2x128xf32> to vector<2x96xf32>
    %311 = arith.negf %310 : vector<2x96xf32>
    %312 = math.exp %311 : vector<2x96xf32>
    %cst_53 = arith.constant 1.000000e+00 : f32
    %313 = vector.broadcast %cst_53 : f32 to vector<2x96xf32>
    %314 = arith.addf %313, %312 : vector<2x96xf32>
    %315 = arith.divf %313, %314 : vector<2x96xf32>
    %316 = vector.extract_strided_slice %315 {offsets = [0, 0], sizes = [2, 32], strides = [1, 1]} : vector<2x96xf32> to vector<2x32xf32>
    %317 = vector.extract_strided_slice %315 {offsets = [0, 32], sizes = [2, 32], strides = [1, 1]} : vector<2x96xf32> to vector<2x32xf32>
    %318 = vector.extract_strided_slice %315 {offsets = [0, 64], sizes = [2, 32], strides = [1, 1]} : vector<2x96xf32> to vector<2x32xf32>
    %319 = vector.extract_strided_slice %309 {offsets = [0, 96], sizes = [2, 32], strides = [1, 1]} : vector<2x128xf32> to vector<2x32xf32>
    %320 = math.tanh %319 : vector<2x32xf32>
    %321 = arith.mulf %317, %284 : vector<2x32xf32>
    %322 = arith.mulf %316, %320 : vector<2x32xf32>
    %323 = arith.addf %321, %322 : vector<2x32xf32>
    %324 = math.tanh %323 : vector<2x32xf32>
    %325 = arith.mulf %318, %324 : vector<2x32xf32>
    %c0_54 = arith.constant 0 : index
    %c0_55 = arith.constant 0 : index
    %326 = vector.load %arg7[%c0_54, %c0_55] : memref<1x32xf32, #tpu.memory_space<vmem>>, vector<1x32xf32>
    %327 = vector.broadcast %326 : vector<1x32xf32> to vector<2x32xf32>
    %328 = arith.mulf %325, %327 : vector<2x32xf32>
    %cst_56 = arith.constant dense<0.000000e+00> : vector<2xf32>
    %329 = vector.multi_reduction <add>, %328, %cst_56 [1] : vector<2x32xf32> to vector<2xf32>
    %330 = vector.shape_cast %329 : vector<2xf32> to vector<2x1xf32>
    %c0_57 = arith.constant 0 : index
    %c0_58 = arith.constant 0 : index
    %331 = vector.load %arg8[%c0_57, %c0_58] : memref<1x1xf32, #tpu.memory_space<vmem>>, vector<1x1xf32>
    %332 = vector.broadcast %331 : vector<1x1xf32> to vector<2x1xf32>
    %333 = arith.addf %330, %332 : vector<2x1xf32>
    %c0_59 = arith.constant 0 : index
    %c0_60 = arith.constant 0 : index
    %334 = vector.load %arg9[%c0_59, %c0_60] : memref<2x1xf32, #tpu.memory_space<vmem>>, vector<2x1xf32>
    tpu.vector_store %arg9[%c0_59, %c0_60], %333 {strides = array<i32>} : memref<2x1xf32, #tpu.memory_space<vmem>>, vector<2x1xf32>,
    return
  }
}

</mosaic_0001>

<llo_original>
// kernel: lstm_model_forward.1
$region0: #{lstm_model_forward.1}
  #allocation0 [shape = 'u32[]', space=smem, size = 0x4, offset = 0x4, fixed_abs, tag = 'smem constant byte address 0x4 - core index']
  #allocation1 [shape = 'u32[144,128]{1,0:T(1,128)}', space=vmem, size = 0x12000, scoped, tag = 'internal scratch']
  #allocation2 [shape = 'f32[1,1]{1,0:T(1,128)S(1)}', space=vmem, size = 0x200, scoped, tag = 'scoped memory for lstm_model_forward.1']
  %s0 = inlined_call_operand.vmem [shape: f32[16,4], index: 0, kind: input, shape index: {}]
  %s1 = inlined_call_operand.vmem [shape: f32[4,128], index: 1, kind: input, shape index: {}]
  %s2 = inlined_call_operand.vmem [shape: f32[32,128], index: 2, kind: input, shape index: {}]
  %s3 = inlined_call_operand.vmem [shape: f32[1,128], index: 3, kind: input, shape index: {}]
  %s4 = inlined_call_operand.hbm [shape: f32[32,128], index: 4, kind: input, shape index: {}]
  %s5 = inlined_call_operand.hbm [shape: f32[32,128], index: 5, kind: input, shape index: {}]
  %s6 = inlined_call_operand.vmem [shape: f32[1,128], index: 6, kind: input, shape index: {}]
  %s7 = inlined_call_operand.vmem [shape: f32[1,32], index: 7, kind: input, shape index: {}]
  %s8 = inlined_call_operand.<no memory space> [shape: f32[1,1], index: 8, kind: input, shape index: {}]
  %s9 = inlined_call_operand.vmem [shape: f32[2,1], index: 9, kind: output, shape index: {}]
  %s10 = sld [smem:[#allocation0]]
  $region54: #{lstm_model_forward.1} parent=0
    _
  %s12 = ssub.s32 1, %s10
  %s13 = scalar_select 0, %s12, %s10
  %v14 = vstv %s8
  %15 = vst [vmem:[#allocation2] sm:$0x1] %v14
  $region1: #{lstm_model_forward.1} parent=0
    #allocation3 [shape = 'u8[16384]{0}', space=vmem, size = 0x4000, scoped, tag = 'input window, operand 4, single buffered']
    #allocation4 [shape = 's32[1]{0}', space=sflag, size = 0x4, scoped, tag = 'scoped memory for lstm_model_forward.1']
    #allocation5 [shape = 'u8[16384]{0}', space=vmem, size = 0x4000, scoped, tag = 'input window, operand 5, single buffered']
    #allocation6 [shape = 's32[1]{0}', space=sflag, size = 0x4, scoped, tag = 'scoped memory for lstm_model_forward.1']
    %16 = vsyncpa [#allocation4], 0
    %17 = vsyncpa [#allocation6], 0
    // Predicated region
    $region2: #{lstm_model_forward.1} parent=1 // pred_check
      _
    $region3: #{lstm_model_forward.1} parent=1 // pred_check_branch
      %19 = sbr.rel (0) target = $region5
    $region4: #{lstm_model_forward.1} parent=1 // pred_region
      _
    $region5: #{lstm_model_forward.1} parent=1 // pred_fallthru
      _
    // Predicated region
    $region6: #{lstm_model_forward.1} parent=1 // pred_check
      _
    $region7: #{lstm_model_forward.1} parent=1 // pred_check_branch
      %21 = sbr.rel (0) target = $region9
    $region8: #{lstm_model_forward.1} parent=1 // pred_region
      _
    $region9: #{lstm_model_forward.1} parent=1 // pred_fallthru
      _
    // Predicated region
    $region10: #{lstm_model_forward.1} parent=1 // pred_check
      _
    $region11: #{lstm_model_forward.1} parent=1 // pred_check_branch
      %23 = sbr.rel (0) target = $region13
    $region12: #{lstm_model_forward.1} parent=1 // pred_region
      _
    $region13: #{lstm_model_forward.1} parent=1 // pred_fallthru
      _
    // Predicated region
    $region14: #{lstm_model_forward.1} parent=1 // pred_check
      _
    $region15: #{lstm_model_forward.1} parent=1 // pred_check_branch
      %25 = sbr.rel (0) target = $region17
    $region16: #{lstm_model_forward.1} parent=1 // pred_region
      _
    $region17: #{lstm_model_forward.1} parent=1 // pred_fallthru
      _
    // Predicated region
    $region18: #{lstm_model_forward.1} parent=1 // pred_check
      _
    $region19: #{lstm_model_forward.1} parent=1 // pred_check_branch
      %27 = sbr.rel (0) target = $region21
    $region20: #{lstm_model_forward.1} parent=1 // pred_region
      %s29 = ssub.s32 512, 512
      %30 = vsyncadd [#allocation4], %s29
      %s31 = sshll.u32 [#allocation3], 4
      %s32 = int_to_ptr.vmem [resolvable:$true] %s31
      %37 = dma.hbm_to_vmem [thread:$0]  %s4, 512, %s32, [#allocation4], 128, 128, 8
    $region21: #{lstm_model_forward.1} parent=1 // pred_fallthru
      _
    // Predicated region
    $region22: #{lstm_model_forward.1} parent=1 // pred_check
      _
    $region23: #{lstm_model_forward.1} parent=1 // pred_check_branch
      %39 = sbr.rel (0) target = $region25
    $region24: #{lstm_model_forward.1} parent=1 // pred_region
      %s41 = ssub.s32 512, 512
      %42 = vsyncadd [#allocation6], %s41
      %s43 = sshll.u32 [#allocation5], 4
      %s44 = int_to_ptr.vmem [resolvable:$true] %s43
      %49 = dma.hbm_to_vmem [thread:$0]  %s5, 512, %s44, [#allocation6], 128, 128, 8
    $region25: #{lstm_model_forward.1} parent=1 // pred_fallthru
      _
    // Predicated region
    $region26: #{lstm_model_forward.1} parent=1 // pred_check
      _
    $region27: #{lstm_model_forward.1} parent=1 // pred_check_branch
      %51 = sbr.rel (0) target = $region29
    $region28: #{lstm_model_forward.1} parent=1 // pred_region
      _
    $region29: #{lstm_model_forward.1} parent=1 // pred_fallthru
      _
    // Predicated region
    $region30: #{lstm_model_forward.1} parent=1 // pred_check
      _
    $region31: #{lstm_model_forward.1} parent=1 // pred_check_branch
      %53 = sbr.rel (0) target = $region33
    $region32: #{lstm_model_forward.1} parent=1 // pred_region
      _
    $region33: #{lstm_model_forward.1} parent=1 // pred_fallthru
      _
    // Predicated region
    $region34: #{lstm_model_forward.1} parent=1 // pred_check
      _
    $region35: #{lstm_model_forward.1} parent=1 // pred_check_branch
      %55 = sbr.rel (0) target = $region37
    $region36: #{lstm_model_forward.1} parent=1 // pred_region
      _
    $region37: #{lstm_model_forward.1} parent=1 // pred_fallthru
      _
    // Predicated region
    $region38: #{lstm_model_forward.1} parent=1 // pred_check
      _
    $region39: #{lstm_model_forward.1} parent=1 // pred_check_branch
      %57 = sbr.rel (0) target = $region41
    $region40: #{lstm_model_forward.1} parent=1 // pred_region
      %58 = dma.done [#allocation4], 512
    $region41: #{lstm_model_forward.1} parent=1 // pred_fallthru
      _
    // Predicated region
    $region42: #{lstm_model_forward.1} parent=1 // pred_check
      _
    $region43: #{lstm_model_forward.1} parent=1 // pred_check_branch
      %60 = sbr.rel (0) target = $region45
    $region44: #{lstm_model_forward.1} parent=1 // pred_region
      %61 = dma.done [#allocation6], 512
    $region45: #{lstm_model_forward.1} parent=1 // pred_fallthru
      _
    %v62 = vld [vmem:[%s0] sm:$0xff]
    %v63 = vld [vmem:[%s0 + $0x8] sm:$0xff]
    %v64 = vld [vmem:[%s1] sm:$0xf]
    %v65 = vld [vmem:[%s3] sm:$0x1]
    %v67 = vlaneseq
    %v68 = vshrl.u32 %v67, 7
    %v69 = vsub.s32 0, %v68
    %v70 = vrot.slane %v65, %v69
    %vm72 = vcmask 31744
    %v74 = vsel %vm72, %v62, 0
    %v77 = vsel %vm72, %v63, 0
    %vm79 = vcmask 1043456
    %v81 = vsel %vm79, %v64, 0
    %83 = vmatprep.subr.mxu0 0.0
    %84 = vmatpush1.msra.mxu0 %v81
    %85 = vmatprep.subr.mxu0 0.0
    %86 = vmatpush1.msra.mxu0 0.0
    %87 = vmatprep.subr.mxu0 0.0
    %88 = vmatpush1.msra.mxu0 0.0
    %89 = vmatprep.subr.mxu0 0.0
    %90 = vmatpush1.msra.mxu0 0.0
    %91 = vmatprep.subr.mxu0 0.0
    %92 = vmatpush1.msra.mxu0 0.0
    %93 = vmatprep.subr.mxu0 0.0
    %94 = vmatpush1.msra.mxu0 0.0
    %95 = vmatprep.subr.mxu0 0.0
    %96 = vmatpush1.msra.mxu0 0.0
    %97 = vmatprep.subr.mxu0 0.0
    %98 = vmatpush1.msra.mxu0 0.0
    %99 = vmatprep.subr.mxu0 0.0
    %100 = vmatpush1.msra.mxu0 0.0
    %101 = vmatprep.subr.mxu0 0.0
    %102 = vmatpush1.msra.mxu0 0.0
    %103 = vmatprep.subr.mxu0 0.0
    %104 = vmatpush1.msra.mxu0 0.0
    %105 = vmatprep.subr.mxu0 0.0
    %106 = vmatpush1.msra.mxu0 0.0
    %107 = vmatprep.subr.mxu0 0.0
    %108 = vmatpush1.msra.mxu0 0.0
    %109 = vmatprep.subr.mxu0 0.0
    %110 = vmatpush1.msra.mxu0 0.0
    %111 = vmatprep.subr.mxu0 0.0
    %112 = vmatpush1.msra.mxu0 0.0
    %113 = vmatprep.subr.mxu0 0.0
    %114 = vmatpush1.msra.mxu0 0.0
    %115 = vmatprep.subr.mxu0 0.0
    %116 = vmatpush1.msra.mxu0 0.0
    %117 = vmatprep.subr.mxu0 0.0
    %118 = vmatpush1.msra.mxu0 0.0
    %119 = vmatprep.subr.mxu0 0.0
    %120 = vmatpush1.msra.mxu0 0.0
    %121 = vmatprep.subr.mxu0 0.0
    %122 = vmatpush1.msra.mxu0 0.0
    %123 = vmatprep.subr.mxu0 0.0
    %124 = vmatpush1.msra.mxu0 0.0
    %125 = vmatprep.subr.mxu0 0.0
    %126 = vmatpush1.msra.mxu0 0.0
    %127 = vmatprep.subr.mxu0 0.0
    %128 = vmatpush1.msra.mxu0 0.0
    %129 = vmatprep.subr.mxu0 0.0
    %130 = vmatpush1.msra.mxu0 0.0
    %131 = vmatprep.subr.mxu0 0.0
    %132 = vmatpush1.msra.mxu0 0.0
    %133 = vmatprep.subr.mxu0 0.0
    %134 = vmatpush1.msra.mxu0 0.0
    %135 = vmatprep.subr.mxu0 0.0
    %136 = vmatpush1.msra.mxu0 0.0
    %137 = vmatprep.subr.mxu0 0.0
    %138 = vmatpush1.msra.mxu0 0.0
    %139 = vmatprep.subr.mxu0 0.0
    %140 = vmatpush1.msra.mxu0 0.0
    %141 = vmatprep.subr.mxu0 0.0
    %142 = vmatpush1.msra.mxu0 0.0
    %143 = vmatprep.subr.mxu0 0.0
    %144 = vmatpush1.msra.mxu0 0.0
    %145 = vmatprep.subr.mxu0 0.0
    %146 = vmatpush1.msra.mxu0 0.0
    %147 = vmatprep.mubr.f32.mxu0 0.0
    %148 = vmatmul.mubr.f32.gmra.mrb[0].mxu0 %v74
    %v149 = vpop.f32.mrb[0].mxu0
    %v150 = vadd.f32 %v70, %v149
    %v151 = vpop.f32.mrb[0].mxu0
    %152 = vmatprep.mubr.f32.mxu0 0.0
    %153 = vmatmul.mubr.f32.gmra.mrb[0].mxu0 %v77
    %v154 = vpop.f32.mrb[0].mxu0
    %v155 = vadd.f32 %v70, %v154
    %v156 = vpop.f32.mrb[0].mxu0
    %157 = vdwg.mxu0
    %v158 = vld [vmem:[%s2] sm:$0xff]
    %v159 = vld [vmem:[%s2 + $0x8] sm:$0xff]
    %v160 = vld [vmem:[%s2 + $0x10] sm:$0xff]
    %v161 = vld [vmem:[%s2 + $0x18] sm:$0xff]
    %v162 = vld [vmem:[#allocation3] sm:$0xff]
    %v163 = vld [vmem:[#allocation3 + $0x8] sm:$0xff]
    %v164 = vld [vmem:[#allocation3 + $0x10] sm:$0xff]
    %v165 = vld [vmem:[#allocation3 + $0x18] sm:$0xff]
    %v166 = vld [vmem:[#allocation5] sm:$0xff]
    %v167 = vld [vmem:[#allocation5 + $0x8] sm:$0xff]
    %v168 = vld [vmem:[#allocation5 + $0x10] sm:$0xff]
    %v169 = vld [vmem:[#allocation5 + $0x18] sm:$0xff]
    %v170 = vld [vmem:[%s6] sm:$0x1]
    %v172 = vlaneseq
    %v173 = vshrl.u32 %v172, 7
    %v174 = vsub.s32 0, %v173
    %v175 = vrot.slane %v170, %v174
    %vm177 = vcmask 261120
    %v179 = vsel %vm177, 0.0, 0
    %181 = vmatprep.subr.mxu0 0.0
    %182 = vmatpush1.msra.mxu0 %v158
    %183 = vmatprep.subr.mxu0 0.0
    %184 = vmatpush1.msra.mxu0 %v159
    %185 = vmatprep.subr.mxu0 0.0
    %186 = vmatpush1.msra.mxu0 %v160
    %187 = vmatprep.subr.mxu0 0.0
    %188 = vmatpush1.msra.mxu0 %v161
    %189 = vmatprep.subr.mxu0 0.0
    %190 = vmatpush1.msra.mxu0 0.0
    %191 = vmatprep.subr.mxu0 0.0
    %192 = vmatpush1.msra.mxu0 0.0
    %193 = vmatprep.subr.mxu0 0.0
    %194 = vmatpush1.msra.mxu0 0.0
    %195 = vmatprep.subr.mxu0 0.0
    %196 = vmatpush1.msra.mxu0 0.0
    %197 = vmatprep.subr.mxu0 0.0
    %198 = vmatpush1.msra.mxu0 0.0
    %199 = vmatprep.subr.mxu0 0.0
    %200 = vmatpush1.msra.mxu0 0.0
    %201 = vmatprep.subr.mxu0 0.0
    %202 = vmatpush1.msra.mxu0 0.0
    %203 = vmatprep.subr.mxu0 0.0
    %204 = vmatpush1.msra.mxu0 0.0
    %205 = vmatprep.subr.mxu0 0.0
    %206 = vmatpush1.msra.mxu0 0.0
    %207 = vmatprep.subr.mxu0 0.0
    %208 = vmatpush1.msra.mxu0 0.0
    %209 = vmatprep.subr.mxu0 0.0
    %210 = vmatpush1.msra.mxu0 0.0
    %211 = vmatprep.subr.mxu0 0.0
    %212 = vmatpush1.msra.mxu0 0.0
    %213 = vmatprep.subr.mxu0 0.0
    %214 = vmatpush1.msra.mxu0 0.0
    %215 = vmatprep.subr.mxu0 0.0
    %216 = vmatpush1.msra.mxu0 0.0
    %217 = vmatprep.subr.mxu0 0.0
    %218 = vmatpush1.msra.mxu0 0.0
    %219 = vmatprep.subr.mxu0 0.0
    %220 = vmatpush1.msra.mxu0 0.0
    %221 = vmatprep.subr.mxu0 0.0
    %222 = vmatpush1.msra.mxu0 0.0
    %223 = vmatprep.subr.mxu0 0.0
    %224 = vmatpush1.msra.mxu0 0.0
    %225 = vmatprep.subr.mxu0 0.0
    %226 = vmatpush1.msra.mxu0 0.0
    %227 = vmatprep.subr.mxu0 0.0
    %228 = vmatpush1.msra.mxu0 0.0
    %229 = vmatprep.subr.mxu0 0.0
    %230 = vmatpush1.msra.mxu0 0.0
    %231 = vmatprep.subr.mxu0 0.0
    %232 = vmatpush1.msra.mxu0 0.0
    %233 = vmatprep.subr.mxu0 0.0
    %234 = vmatpush1.msra.mxu0 0.0
    %235 = vmatprep.subr.mxu0 0.0
    %236 = vmatpush1.msra.mxu0 0.0
    %237 = vmatprep.subr.mxu0 0.0
    %238 = vmatpush1.msra.mxu0 0.0
    %239 = vmatprep.subr.mxu0 0.0
    %240 = vmatpush1.msra.mxu0 0.0
    %241 = vmatprep.subr.mxu0 0.0
    %242 = vmatpush1.msra.mxu0 0.0
    %243 = vmatprep.subr.mxu0 0.0
    %244 = vmatpush1.msra.mxu0 0.0
    %245 = vmatprep.mubr.f32.mxu0 0.0
    %246 = vmatmul.mubr.f32.gmra.mrb[0].mxu0 %v179
    %v247 = vpop.f32.mrb[0].mxu0
    %v248 = vadd.f32 %v150, %v247
    %v249 = vpop.f32.mrb[0].mxu0
    %250 = vdwg.mxu0
    %v251 = vxor.u32 %v248, 2147483648
    %v252 = vmul.f32 %v251, 1.442695
    %v253 = vpow.pop %v252
    %v254 = vadd.f32 %v253, 1.0
    %v255 = vrcp.pop %v254
    %v256 = vmul.f32 1.0, %v255
    %v257 = vtanh.pop %v248
    %v258 = vmul.f32 %v256, 0.0
    %260 = vrot.lane.b32.xlu0 %v257, 32
    %v261 = vpop.permute.xlu0 %260
    %v263 = vmul.f32 %v256, %v261
    %265 = vrot.lane.b32.xlu0 %v263, 32
    %v266 = vpop.permute.xlu0 %265
    %v268 = vadd.f32 %v258, %v266
    %v269 = vtanh.pop %v268
    %271 = vrot.lane.b32.xlu0 %v269, 32
    %v272 = vpop.permute.xlu0 %271
    %v274 = vmul.f32 %v256, %v272
    %275 = vmatprep.subr.mxu0 0.0
    %276 = vmatpush1.msra.mxu0 %v166
    %277 = vmatprep.subr.mxu0 0.0
    %278 = vmatpush1.msra.mxu0 %v167
    %279 = vmatprep.subr.mxu0 0.0
    %280 = vmatpush1.msra.mxu0 %v168
    %281 = vmatprep.subr.mxu0 0.0
    %282 = vmatpush1.msra.mxu0 %v169
    %283 = vmatprep.subr.mxu0 0.0
    %284 = vmatpush1.msra.mxu0 0.0
    %285 = vmatprep.subr.mxu0 0.0
    %286 = vmatpush1.msra.mxu0 0.0
    %287 = vmatprep.subr.mxu0 0.0
    %288 = vmatpush1.msra.mxu0 0.0
    %289 = vmatprep.subr.mxu0 0.0
    %290 = vmatpush1.msra.mxu0 0.0
    %291 = vmatprep.subr.mxu0 0.0
    %292 = vmatpush1.msra.mxu0 0.0
    %293 = vmatprep.subr.mxu0 0.0
    %294 = vmatpush1.msra.mxu0 0.0
    %295 = vmatprep.subr.mxu0 0.0
    %296 = vmatpush1.msra.mxu0 0.0
    %297 = vmatprep.subr.mxu0 0.0
    %298 = vmatpush1.msra.mxu0 0.0
    %299 = vmatprep.subr.mxu0 0.0
    %300 = vmatpush1.msra.mxu0 0.0
    %301 = vmatprep.subr.mxu0 0.0
    %302 = vmatpush1.msra.mxu0 0.0
    %303 = vmatprep.subr.mxu0 0.0
    %304 = vmatpush1.msra.mxu0 0.0
    %305 = vmatprep.subr.mxu0 0.0
    %306 = vmatpush1.msra.mxu0 0.0
    %307 = vmatprep.subr.mxu0 0.0
    %308 = vmatpush1.msra.mxu0 0.0
    %309 = vmatprep.subr.mxu0 0.0
    %310 = vmatpush1.msra.mxu0 0.0
    %311 = vmatprep.subr.mxu0 0.0
    %312 = vmatpush1.msra.mxu0 0.0
    %313 = vmatprep.subr.mxu0 0.0
    %314 = vmatpush1.msra.mxu0 0.0
    %315 = vmatprep.subr.mxu0 0.0
    %316 = vmatpush1.msra.mxu0 0.0
    %317 = vmatprep.subr.mxu0 0.0
    %318 = vmatpush1.msra.mxu0 0.0
    %319 = vmatprep.subr.mxu0 0.0
    %320 = vmatpush1.msra.mxu0 0.0
    %321 = vmatprep.subr.mxu0 0.0
    %322 = vmatpush1.msra.mxu0 0.0
    %323 = vmatprep.subr.mxu0 0.0
    %324 = vmatpush1.msra.mxu0 0.0
    %325 = vmatprep.subr.mxu0 0.0
    %326 = vmatpush1.msra.mxu0 0.0
    %327 = vmatprep.subr.mxu0 0.0
    %328 = vmatpush1.msra.mxu0 0.0
    %329 = vmatprep.subr.mxu0 0.0
    %330 = vmatpush1.msra.mxu0 0.0
    %331 = vmatprep.subr.mxu0 0.0
    %332 = vmatpush1.msra.mxu0 0.0
    %333 = vmatprep.subr.mxu0 0.0
    %334 = vmatpush1.msra.mxu0 0.0
    %335 = vmatprep.subr.mxu0 0.0
    %336 = vmatpush1.msra.mxu0 0.0
    %337 = vmatprep.subr.mxu0 0.0
    %338 = vmatpush1.msra.mxu0 0.0
    %339 = vmatprep.mubr.f32.mxu0 0.0
    %340 = vmatmul.mubr.f32.gmra.mrb[0].mxu0 %v179
    %v341 = vpop.f32.mrb[0].mxu0
    %v342 = vadd.f32 0.0, %v341
    %v343 = vpop.f32.mrb[0].mxu0
    %344 = vdwg.mxu0
    %346 = vrot.lane.b32.xlu0 %v274, 64
    %v347 = vpop.permute.xlu0 %346
    %v348 = vsel %vm177, %v347, 0
    %350 = vmatprep.subr.mxu0 0.0
    %351 = vmatpush1.msra.mxu0 %v162
    %352 = vmatprep.subr.mxu0 0.0
    %353 = vmatpush1.msra.mxu0 %v163
    %354 = vmatprep.subr.mxu0 0.0
    %355 = vmatpush1.msra.mxu0 %v164
    %356 = vmatprep.subr.mxu0 0.0
    %357 = vmatpush1.msra.mxu0 %v165
    %358 = vmatprep.subr.mxu0 0.0
    %359 = vmatpush1.msra.mxu0 0.0
    %360 = vmatprep.subr.mxu0 0.0
    %361 = vmatpush1.msra.mxu0 0.0
    %362 = vmatprep.subr.mxu0 0.0
    %363 = vmatpush1.msra.mxu0 0.0
    %364 = vmatprep.subr.mxu0 0.0
    %365 = vmatpush1.msra.mxu0 0.0
    %366 = vmatprep.subr.mxu0 0.0
    %367 = vmatpush1.msra.mxu0 0.0
    %368 = vmatprep.subr.mxu0 0.0
    %369 = vmatpush1.msra.mxu0 0.0
    %370 = vmatprep.subr.mxu0 0.0
    %371 = vmatpush1.msra.mxu0 0.0
    %372 = vmatprep.subr.mxu0 0.0
    %373 = vmatpush1.msra.mxu0 0.0
    %374 = vmatprep.subr.mxu0 0.0
    %375 = vmatpush1.msra.mxu0 0.0
    %376 = vmatprep.subr.mxu0 0.0
    %377 = vmatpush1.msra.mxu0 0.0
    %378 = vmatprep.subr.mxu0 0.0
    %379 = vmatpush1.msra.mxu0 0.0
    %380 = vmatprep.subr.mxu0 0.0
    %381 = vmatpush1.msra.mxu0 0.0
    %382 = vmatprep.subr.mxu0 0.0
    %383 = vmatpush1.msra.mxu0 0.0
    %384 = vmatprep.subr.mxu0 0.0
    %385 = vmatpush1.msra.mxu0 0.0
    %386 = vmatprep.subr.mxu0 0.0
    %387 = vmatpush1.msra.mxu0 0.0
    %388 = vmatprep.subr.mxu0 0.0
    %389 = vmatpush1.msra.mxu0 0.0
    %390 = vmatprep.subr.mxu0 0.0
    %391 = vmatpush1.msra.mxu0 0.0
    %392 = vmatprep.subr.mxu0 0.0
    %393 = vmatpush1.msra.mxu0 0.0
    %394 = vmatprep.subr.mxu0 0.0
    %395 = vmatpush1.msra.mxu0 0.0
    %396 = vmatprep.subr.mxu0 0.0
    %397 = vmatpush1.msra.mxu0 0.0
    %398 = vmatprep.subr.mxu0 0.0
    %399 = vmatpush1.msra.mxu0 0.0
    %400 = vmatprep.subr.mxu0 0.0
    %401 = vmatpush1.msra.mxu0 0.0
    %402 = vmatprep.subr.mxu0 0.0
    %403 = vmatpush1.msra.mxu0 0.0
    %404 = vmatprep.subr.mxu0 0.0
    %405 = vmatpush1.msra.mxu0 0.0
    %406 = vmatprep.subr.mxu0 0.0
    %407 = vmatpush1.msra.mxu0 0.0
    %408 = vmatprep.subr.mxu0 0.0
    %409 = vmatpush1.msra.mxu0 0.0
    %410 = vmatprep.subr.mxu0 0.0
    %411 = vmatpush1.msra.mxu0 0.0
    %412 = vmatprep.subr.mxu0 0.0
    %413 = vmatpush1.msra.mxu0 0.0
    %414 = vmatprep.mubr.f32.mxu0 0.0
    %415 = vmatmul.mubr.f32.gmra.mrb[0].mxu0 %v348
    %v416 = vpop.f32.mrb[0].mxu0
    %v417 = vadd.f32 %v342, %v416
    %v418 = vpop.f32.mrb[0].mxu0
    %419 = vdwg.mxu0
    %v420 = vadd.f32 %v417, %v175
    %v421 = vxor.u32 %v420, 2147483648
    %v422 = vmul.f32 %v421, 1.442695
    %v423 = vpow.pop %v422
    %v424 = vadd.f32 %v423, 1.0
    %v425 = vrcp.pop %v424
    %v426 = vmul.f32 1.0, %v425
    %v427 = vtanh.pop %v420
    %v428 = vmul.f32 %v426, 0.0
    %430 = vrot.lane.b32.xlu0 %v427, 32
    %v431 = vpop.permute.xlu0 %430
    %v433 = vmul.f32 %v426, %v431
    %435 = vrot.lane.b32.xlu0 %v433, 32
    %v436 = vpop.permute.xlu0 %435
    %v438 = vadd.f32 %v428, %v436
    %v439 = vtanh.pop %v438
    %441 = vrot.lane.b32.xlu0 %v439, 32
    %v442 = vpop.permute.xlu0 %441
    %v444 = vmul.f32 %v426, %v442
    %v446 = vrot.slane %v150, 2
    %448 = vmatprep.subr.mxu0 0.0
    %449 = vmatpush1.msra.mxu0 %v158
    %450 = vmatprep.subr.mxu0 0.0
    %451 = vmatpush1.msra.mxu0 %v159
    %452 = vmatprep.subr.mxu0 0.0
    %453 = vmatpush1.msra.mxu0 %v160
    %454 = vmatprep.subr.mxu0 0.0
    %455 = vmatpush1.msra.mxu0 %v161
    %456 = vmatprep.subr.mxu0 0.0
    %457 = vmatpush1.msra.mxu0 0.0
    %458 = vmatprep.subr.mxu0 0.0
    %459 = vmatpush1.msra.mxu0 0.0
    %460 = vmatprep.subr.mxu0 0.0
    %461 = vmatpush1.msra.mxu0 0.0
    %462 = vmatprep.subr.mxu0 0.0
    %463 = vmatpush1.msra.mxu0 0.0
    %464 = vmatprep.subr.mxu0 0.0
    %465 = vmatpush1.msra.mxu0 0.0
    %466 = vmatprep.subr.mxu0 0.0
    %467 = vmatpush1.msra.mxu0 0.0
    %468 = vmatprep.subr.mxu0 0.0
    %469 = vmatpush1.msra.mxu0 0.0
    %470 = vmatprep.subr.mxu0 0.0
    %471 = vmatpush1.msra.mxu0 0.0
    %472 = vmatprep.subr.mxu0 0.0
    %473 = vmatpush1.msra.mxu0 0.0
    %474 = vmatprep.subr.mxu0 0.0
    %475 = vmatpush1.msra.mxu0 0.0
    %476 = vmatprep.subr.mxu0 0.0
    %477 = vmatpush1.msra.mxu0 0.0
    %478 = vmatprep.subr.mxu0 0.0
    %479 = vmatpush1.msra.mxu0 0.0
    %480 = vmatprep.subr.mxu0 0.0
    %481 = vmatpush1.msra.mxu0 0.0
    %482 = vmatprep.subr.mxu0 0.0
    %483 = vmatpush1.msra.mxu0 0.0
    %484 = vmatprep.subr.mxu0 0.0
    %485 = vmatpush1.msra.mxu0 0.0
    %486 = vmatprep.subr.mxu0 0.0
    %487 = vmatpush1.msra.mxu0 0.0
    %488 = vmatprep.subr.mxu0 0.0
    %489 = vmatpush1.msra.mxu0 0.0
    %490 = vmatprep.subr.mxu0 0.0
    %491 = vmatpush1.msra.mxu0 0.0
    %492 = vmatprep.subr.mxu0 0.0
    %493 = vmatpush1.msra.mxu0 0.0
    %494 = vmatprep.subr.mxu0 0.0
    %495 = vmatpush1.msra.mxu0 0.0
    %496 = vmatprep.subr.mxu0 0.0
    %497 = vmatpush1.msra.mxu0 0.0
    %498 = vmatprep.subr.mxu0 0.0
    %499 = vmatpush1.msra.mxu0 0.0
    %500 = vmatprep.subr.mxu0 0.0
    %501 = vmatpush1.msra.mxu0 0.0
    %502 = vmatprep.subr.mxu0 0.0
    %503 = vmatpush1.msra.mxu0 0.0
    %504 = vmatprep.subr.mxu0 0.0
    %505 = vmatpush1.msra.mxu0 0.0
    %506 = vmatprep.subr.mxu0 0.0
    %507 = vmatpush1.msra.mxu0 0.0
    %508 = vmatprep.subr.mxu0 0.0
    %509 = vmatpush1.msra.mxu0 0.0
    %510 = vmatprep.subr.mxu0 0.0
    %511 = vmatpush1.msra.mxu0 0.0
    %512 = vmatprep.mubr.f32.mxu0 0.0
    %513 = vmatmul.mubr.f32.gmra.mrb[0].mxu0 %v348
    %v514 = vpop.f32.mrb[0].mxu0
    %v515 = vadd.f32 %v446, %v514
    %v516 = vpop.f32.mrb[0].mxu0
    %517 = vdwg.mxu0
    %v518 = vxor.u32 %v515, 2147483648
    %v519 = vmul.f32 %v518, 1.442695
    %v520 = vpow.pop %v519
    %v521 = vadd.f32 %v520, 1.0
    %v522 = vrcp.pop %v521
    %v523 = vmul.f32 1.0, %v522
    %v524 = vtanh.pop %v515
    %v525 = vmul.f32 %v523, %v268
    %527 = vrot.lane.b32.xlu0 %v524, 32
    %v528 = vpop.permute.xlu0 %527
    %v530 = vmul.f32 %v523, %v528
    %532 = vrot.lane.b32.xlu0 %v530, 32
    %v533 = vpop.permute.xlu0 %532
    %v535 = vadd.f32 %v525, %v533
    %v536 = vtanh.pop %v535
    %538 = vrot.lane.b32.xlu0 %v536, 32
    %v539 = vpop.permute.xlu0 %538
    %v541 = vmul.f32 %v523, %v539
    %543 = vrot.lane.b32.xlu0 %v444, 64
    %v544 = vpop.permute.xlu0 %543
    %v545 = vsel %vm177, %v544, 0
    %547 = vmatprep.subr.mxu0 0.0
    %548 = vmatpush1.msra.mxu0 %v166
    %549 = vmatprep.subr.mxu0 0.0
    %550 = vmatpush1.msra.mxu0 %v167
    %551 = vmatprep.subr.mxu0 0.0
    %552 = vmatpush1.msra.mxu0 %v168
    %553 = vmatprep.subr.mxu0 0.0
    %554 = vmatpush1.msra.mxu0 %v169
    %555 = vmatprep.subr.mxu0 0.0
    %556 = vmatpush1.msra.mxu0 0.0
    %557 = vmatprep.subr.mxu0 0.0
    %558 = vmatpush1.msra.mxu0 0.0
    %559 = vmatprep.subr.mxu0 0.0
    %560 = vmatpush1.msra.mxu0 0.0
    %561 = vmatprep.subr.mxu0 0.0
    %562 = vmatpush1.msra.mxu0 0.0
    %563 = vmatprep.subr.mxu0 0.0
    %564 = vmatpush1.msra.mxu0 0.0
    %565 = vmatprep.subr.mxu0 0.0
    %566 = vmatpush1.msra.mxu0 0.0
    %567 = vmatprep.subr.mxu0 0.0
    %568 = vmatpush1.msra.mxu0 0.0
    %569 = vmatprep.subr.mxu0 0.0
    %570 = vmatpush1.msra.mxu0 0.0
    %571 = vmatprep.subr.mxu0 0.0
    %572 = vmatpush1.msra.mxu0 0.0
    %573 = vmatprep.subr.mxu0 0.0
    %574 = vmatpush1.msra.mxu0 0.0
    %575 = vmatprep.subr.mxu0 0.0
    %576 = vmatpush1.msra.mxu0 0.0
    %577 = vmatprep.subr.mxu0 0.0
    %578 = vmatpush1.msra.mxu0 0.0
    %579 = vmatprep.subr.mxu0 0.0
    %580 = vmatpush1.msra.mxu0 0.0
    %581 = vmatprep.subr.mxu0 0.0
    %582 = vmatpush1.msra.mxu0 0.0
    %583 = vmatprep.subr.mxu0 0.0
    %584 = vmatpush1.msra.mxu0 0.0
    %585 = vmatprep.subr.mxu0 0.0
    %586 = vmatpush1.msra.mxu0 0.0
    %587 = vmatprep.subr.mxu0 0.0
    %588 = vmatpush1.msra.mxu0 0.0
    %589 = vmatprep.subr.mxu0 0.0
    %590 = vmatpush1.msra.mxu0 0.0
    %591 = vmatprep.subr.mxu0 0.0
    %592 = vmatpush1.msra.mxu0 0.0
    %593 = vmatprep.subr.mxu0 0.0
    %594 = vmatpush1.msra.mxu0 0.0
    %595 = vmatprep.subr.mxu0 0.0
    %596 = vmatpush1.msra.mxu0 0.0
    %597 = vmatprep.subr.mxu0 0.0
    %598 = vmatpush1.msra.mxu0 0.0
    %599 = vmatprep.subr.mxu0 0.0
    %600 = vmatpush1.msra.mxu0 0.0
    %601 = vmatprep.subr.mxu0 0.0
    %602 = vmatpush1.msra.mxu0 0.0
    %603 = vmatprep.subr.mxu0 0.0
    %604 = vmatpush1.msra.mxu0 0.0
    %605 = vmatprep.subr.mxu0 0.0
    %606 = vmatpush1.msra.mxu0 0.0
    %607 = vmatprep.subr.mxu0 0.0
    %608 = vmatpush1.msra.mxu0 0.0
    %609 = vmatprep.subr.mxu0 0.0
    %610 = vmatpush1.msra.mxu0 0.0
    %611 = vmatprep.mubr.f32.mxu0 0.0
    %612 = vmatmul.mubr.f32.gmra.mrb[0].mxu0 %v545
    %v613 = vpop.f32.mrb[0].mxu0
    %v614 = vadd.f32 0.0, %v613
    %v615 = vpop.f32.mrb[0].mxu0
    %616 = vdwg.mxu0
    %618 = vrot.lane.b32.xlu0 %v541, 64
    %v619 = vpop.permute.xlu0 %618
    %v620 = vsel %vm177, %v619, 0
    %622 = vmatprep.subr.mxu0 0.0
    %623 = vmatpush1.msra.mxu0 %v162
    %624 = vmatprep.subr.mxu0 0.0
    %625 = vmatpush1.msra.mxu0 %v163
    %626 = vmatprep.subr.mxu0 0.0
    %627 = vmatpush1.msra.mxu0 %v164
    %628 = vmatprep.subr.mxu0 0.0
    %629 = vmatpush1.msra.mxu0 %v165
    %630 = vmatprep.subr.mxu0 0.0
    %631 = vmatpush1.msra.mxu0 0.0
    %632 = vmatprep.subr.mxu0 0.0
    %633 = vmatpush1.msra.mxu0 0.0
    %634 = vmatprep.subr.mxu0 0.0
    %635 = vmatpush1.msra.mxu0 0.0
    %636 = vmatprep.subr.mxu0 0.0
    %637 = vmatpush1.msra.mxu0 0.0
    %638 = vmatprep.subr.mxu0 0.0
    %639 = vmatpush1.msra.mxu0 0.0
    %640 = vmatprep.subr.mxu0 0.0
    %641 = vmatpush1.msra.mxu0 0.0
    %642 = vmatprep.subr.mxu0 0.0
    %643 = vmatpush1.msra.mxu0 0.0
    %644 = vmatprep.subr.mxu0 0.0
    %645 = vmatpush1.msra.mxu0 0.0
    %646 = vmatprep.subr.mxu0 0.0
    %647 = vmatpush1.msra.mxu0 0.0
    %648 = vmatprep.subr.mxu0 0.0
    %649 = vmatpush1.msra.mxu0 0.0
    %650 = vmatprep.subr.mxu0 0.0
    %651 = vmatpush1.msra.mxu0 0.0
    %652 = vmatprep.subr.mxu0 0.0
    %653 = vmatpush1.msra.mxu0 0.0
    %654 = vmatprep.subr.mxu0 0.0
    %655 = vmatpush1.msra.mxu0 0.0
    %656 = vmatprep.subr.mxu0 0.0
    %657 = vmatpush1.msra.mxu0 0.0
    %658 = vmatprep.subr.mxu0 0.0
    %659 = vmatpush1.msra.mxu0 0.0
    %660 = vmatprep.subr.mxu0 0.0
    %661 = vmatpush1.msra.mxu0 0.0
    %662 = vmatprep.subr.mxu0 0.0
    %663 = vmatpush1.msra.mxu0 0.0
    %664 = vmatprep.subr.mxu0 0.0
    %665 = vmatpush1.msra.mxu0 0.0
    %666 = vmatprep.subr.mxu0 0.0
    %667 = vmatpush1.msra.mxu0 0.0
    %668 = vmatprep.subr.mxu0 0.0
    %669 = vmatpush1.msra.mxu0 0.0
    %670 = vmatprep.subr.mxu0 0.0
    %671 = vmatpush1.msra.mxu0 0.0
    %672 = vmatprep.subr.mxu0 0.0
    %673 = vmatpush1.msra.mxu0 0.0
    %674 = vmatprep.subr.mxu0 0.0
    %675 = vmatpush1.msra.mxu0 0.0
    %676 = vmatprep.subr.mxu0 0.0
    %677 = vmatpush1.msra.mxu0 0.0
    %678 = vmatprep.subr.mxu0 0.0
    %679 = vmatpush1.msra.mxu0 0.0
    %680 = vmatprep.subr.mxu0 0.0
    %681 = vmatpush1.msra.mxu0 0.0
    %682 = vmatprep.subr.mxu0 0.0
    %683 = vmatpush1.msra.mxu0 0.0
    %684 = vmatprep.subr.mxu0 0.0
    %685 = vmatpush1.msra.mxu0 0.0
    %686 = vmatprep.mubr.f32.mxu0 0.0
    %687 = vmatmul.mubr.f32.gmra.mrb[0].mxu0 %v620
    %v688 = vpop.f32.mrb[0].mxu0
    %v689 = vadd.f32 %v614, %v688
    %v690 = vpop.f32.mrb[0].mxu0
    %691 = vdwg.mxu0
    %v692 = vadd.f32 %v689, %v175
    %v693 = vxor.u32 %v692, 2147483648
    %v694 = vmul.f32 %v693, 1.442695
    %v695 = vpow.pop %v694
    %v696 = vadd.f32 %v695, 1.0
    %v697 = vrcp.pop %v696
    %v698 = vmul.f32 1.0, %v697
    %v699 = vtanh.pop %v692
    %v700 = vmul.f32 %v698, %v438
    %702 = vrot.lane.b32.xlu0 %v699, 32
    %v703 = vpop.permute.xlu0 %702
    %v705 = vmul.f32 %v698, %v703
    %707 = vrot.lane.b32.xlu0 %v705, 32
    %v708 = vpop.permute.xlu0 %707
    %v710 = vadd.f32 %v700, %v708
    %v711 = vtanh.pop %v710
    %713 = vrot.lane.b32.xlu0 %v711, 32
    %v714 = vpop.permute.xlu0 %713
    %v716 = vmul.f32 %v698, %v714
    %v717 = vrot.slane %v150, 4
    %719 = vmatprep.subr.mxu0 0.0
    %720 = vmatpush1.msra.mxu0 %v158
    %721 = vmatprep.subr.mxu0 0.0
    %722 = vmatpush1.msra.mxu0 %v159
    %723 = vmatprep.subr.mxu0 0.0
    %724 = vmatpush1.msra.mxu0 %v160
    %725 = vmatprep.subr.mxu0 0.0
    %726 = vmatpush1.msra.mxu0 %v161
    %727 = vmatprep.subr.mxu0 0.0
    %728 = vmatpush1.msra.mxu0 0.0
    %729 = vmatprep.subr.mxu0 0.0
    %730 = vmatpush1.msra.mxu0 0.0
    %731 = vmatprep.subr.mxu0 0.0
    %732 = vmatpush1.msra.mxu0 0.0
    %733 = vmatprep.subr.mxu0 0.0
    %734 = vmatpush1.msra.mxu0 0.0
    %735 = vmatprep.subr.mxu0 0.0
    %736 = vmatpush1.msra.mxu0 0.0
    %737 = vmatprep.subr.mxu0 0.0
    %738 = vmatpush1.msra.mxu0 0.0
    %739 = vmatprep.subr.mxu0 0.0
    %740 = vmatpush1.msra.mxu0 0.0
    %741 = vmatprep.subr.mxu0 0.0
    %742 = vmatpush1.msra.mxu0 0.0
    %743 = vmatprep.subr.mxu0 0.0
    %744 = vmatpush1.msra.mxu0 0.0
    %745 = vmatprep.subr.mxu0 0.0
    %746 = vmatpush1.msra.mxu0 0.0
    %747 = vmatprep.subr.mxu0 0.0
    %748 = vmatpush1.msra.mxu0 0.0
    %749 = vmatprep.subr.mxu0 0.0
    %750 = vmatpush1.msra.mxu0 0.0
    %751 = vmatprep.subr.mxu0 0.0
    %752 = vmatpush1.msra.mxu0 0.0
    %753 = vmatprep.subr.mxu0 0.0
    %754 = vmatpush1.msra.mxu0 0.0
    %755 = vmatprep.subr.mxu0 0.0
    %756 = vmatpush1.msra.mxu0 0.0
    %757 = vmatprep.subr.mxu0 0.0
    %758 = vmatpush1.msra.mxu0 0.0
    %759 = vmatprep.subr.mxu0 0.0
    %760 = vmatpush1.msra.mxu0 0.0
    %761 = vmatprep.subr.mxu0 0.0
    %762 = vmatpush1.msra.mxu0 0.0
    %763 = vmatprep.subr.mxu0 0.0
    %764 = vmatpush1.msra.mxu0 0.0
    %765 = vmatprep.subr.mxu0 0.0
    %766 = vmatpush1.msra.mxu0 0.0
    %767 = vmatprep.subr.mxu0 0.0
    %768 = vmatpush1.msra.mxu0 0.0
    %769 = vmatprep.subr.mxu0 0.0
    %770 = vmatpush1.msra.mxu0 0.0
    %771 = vmatprep.subr.mxu0 0.0
    %772 = vmatpush1.msra.mxu0 0.0
    %773 = vmatprep.subr.mxu0 0.0
    %774 = vmatpush1.msra.mxu0 0.0
    %775 = vmatprep.subr.mxu0 0.0
    %776 = vmatpush1.msra.mxu0 0.0
    %777 = vmatprep.subr.mxu0 0.0
    %778 = vmatpush1.msra.mxu0 0.0
    %779 = vmatprep.subr.mxu0 0.0
    %780 = vmatpush1.msra.mxu0 0.0
    %781 = vmatprep.subr.mxu0 0.0
    %782 = vmatpush1.msra.mxu0 0.0
    %783 = vmatprep.mubr.f32.mxu0 0.0
    %784 = vmatmul.mubr.f32.gmra.mrb[0].mxu0 %v620
    %v785 = vpop.f32.mrb[0].mxu0
    %v786 = vadd.f32 %v717, %v785
    %v787 = vpop.f32.mrb[0].mxu0
    %788 = vdwg.mxu0
    %v789 = vxor.u32 %v786, 2147483648
    %v790 = vmul.f32 %v789, 1.442695
    %v791 = vpow.pop %v790
    %v792 = vadd.f32 %v791, 1.0
    %v793 = vrcp.pop %v792
    %v794 = vmul.f32 1.0, %v793
    %v795 = vtanh.pop %v786
    %v796 = vmul.f32 %v794, %v535
    %798 = vrot.lane.b32.xlu0 %v795, 32
    %v799 = vpop.permute.xlu0 %798
    %v801 = vmul.f32 %v794, %v799
    %803 = vrot.lane.b32.xlu0 %v801, 32
    %v804 = vpop.permute.xlu0 %803
    %v806 = vadd.f32 %v796, %v804
    %v807 = vtanh.pop %v806
    %809 = vrot.lane.b32.xlu0 %v807, 32
    %v810 = vpop.permute.xlu0 %809
    %v812 = vmul.f32 %v794, %v810
    %814 = vrot.lane.b32.xlu0 %v716, 64
    %v815 = vpop.permute.xlu0 %814
    %v816 = vsel %vm177, %v815, 0
    %818 = vmatprep.subr.mxu0 0.0
    %819 = vmatpush1.msra.mxu0 %v166
    %820 = vmatprep.subr.mxu0 0.0
    %821 = vmatpush1.msra.mxu0 %v167
    %822 = vmatprep.subr.mxu0 0.0
    %823 = vmatpush1.msra.mxu0 %v168
    %824 = vmatprep.subr.mxu0 0.0
    %825 = vmatpush1.msra.mxu0 %v169
    %826 = vmatprep.subr.mxu0 0.0
    %827 = vmatpush1.msra.mxu0 0.0
    %828 = vmatprep.subr.mxu0 0.0
    %829 = vmatpush1.msra.mxu0 0.0
    %830 = vmatprep.subr.mxu0 0.0
    %831 = vmatpush1.msra.mxu0 0.0
    %832 = vmatprep.subr.mxu0 0.0
    %833 = vmatpush1.msra.mxu0 0.0
    %834 = vmatprep.subr.mxu0 0.0
    %835 = vmatpush1.msra.mxu0 0.0
    %836 = vmatprep.subr.mxu0 0.0
    %837 = vmatpush1.msra.mxu0 0.0
    %838 = vmatprep.subr.mxu0 0.0
    %839 = vmatpush1.msra.mxu0 0.0
    %840 = vmatprep.subr.mxu0 0.0
    %841 = vmatpush1.msra.mxu0 0.0
    %842 = vmatprep.subr.mxu0 0.0
    %843 = vmatpush1.msra.mxu0 0.0
    %844 = vmatprep.subr.mxu0 0.0
    %845 = vmatpush1.msra.mxu0 0.0
    %846 = vmatprep.subr.mxu0 0.0
    %847 = vmatpush1.msra.mxu0 0.0
    %848 = vmatprep.subr.mxu0 0.0
    %849 = vmatpush1.msra.mxu0 0.0
    %850 = vmatprep.subr.mxu0 0.0
    %851 = vmatpush1.msra.mxu0 0.0
    %852 = vmatprep.subr.mxu0 0.0
    %853 = vmatpush1.msra.mxu0 0.0
    %854 = vmatprep.subr.mxu0 0.0
    %855 = vmatpush1.msra.mxu0 0.0
    %856 = vmatprep.subr.mxu0 0.0
    %857 = vmatpush1.msra.mxu0 0.0
    %858 = vmatprep.subr.mxu0 0.0
    %859 = vmatpush1.msra.mxu0 0.0
    %860 = vmatprep.subr.mxu0 0.0
    %861 = vmatpush1.msra.mxu0 0.0
    %862 = vmatprep.subr.mxu0 0.0
    %863 = vmatpush1.msra.mxu0 0.0
    %864 = vmatprep.subr.mxu0 0.0
    %865 = vmatpush1.msra.mxu0 0.0
    %866 = vmatprep.subr.mxu0 0.0
    %867 = vmatpush1.msra.mxu0 0.0
    %868 = vmatprep.subr.mxu0 0.0
    %869 = vmatpush1.msra.mxu0 0.0
    %870 = vmatprep.subr.mxu0 0.0
    %871 = vmatpush1.msra.mxu0 0.0
    %872 = vmatprep.subr.mxu0 0.0
    %873 = vmatpush1.msra.mxu0 0.0
    %874 = vmatprep.subr.mxu0 0.0
    %875 = vmatpush1.msra.mxu0 0.0
    %876 = vmatprep.subr.mxu0 0.0
    %877 = vmatpush1.msra.mxu0 0.0
    %878 = vmatprep.subr.mxu0 0.0
    %879 = vmatpush1.msra.mxu0 0.0
    %880 = vmatprep.subr.mxu0 0.0
    %881 = vmatpush1.msra.mxu0 0.0
    %882 = vmatprep.mubr.f32.mxu0 0.0
    %883 = vmatmul.mubr.f32.gmra.mrb[0].mxu0 %v816
    %v884 = vpop.f32.mrb[0].mxu0
    %v885 = vadd.f32 0.0, %v884
    %v886 = vpop.f32.mrb[0].mxu0
    %887 = vdwg.mxu0
    %889 = vrot.lane.b32.xlu0 %v812, 64
    %v890 = vpop.permute.xlu0 %889
    %v891 = vsel %vm177, %v890, 0
    %893 = vmatprep.subr.mxu0 0.0
    %894 = vmatpush1.msra.mxu0 %v162
    %895 = vmatprep.subr.mxu0 0.0
    %896 = vmatpush1.msra.mxu0 %v163
    %897 = vmatprep.subr.mxu0 0.0
    %898 = vmatpush1.msra.mxu0 %v164
    %899 = vmatprep.subr.mxu0 0.0
    %900 = vmatpush1.msra.mxu0 %v165
    %901 = vmatprep.subr.mxu0 0.0
    %902 = vmatpush1.msra.mxu0 0.0
    %903 = vmatprep.subr.mxu0 0.0
    %904 = vmatpush1.msra.mxu0 0.0
    %905 = vmatprep.subr.mxu0 0.0
    %906 = vmatpush1.msra.mxu0 0.0
    %907 = vmatprep.subr.mxu0 0.0
    %908 = vmatpush1.msra.mxu0 0.0
    %909 = vmatprep.subr.mxu0 0.0
    %910 = vmatpush1.msra.mxu0 0.0
    %911 = vmatprep.subr.mxu0 0.0
    %912 = vmatpush1.msra.mxu0 0.0
    %913 = vmatprep.subr.mxu0 0.0
    %914 = vmatpush1.msra.mxu0 0.0
    %915 = vmatprep.subr.mxu0 0.0
    %916 = vmatpush1.msra.mxu0 0.0
    %917 = vmatprep.subr.mxu0 0.0
    %918 = vmatpush1.msra.mxu0 0.0
    %919 = vmatprep.subr.mxu0 0.0
    %920 = vmatpush1.msra.mxu0 0.0
    %921 = vmatprep.subr.mxu0 0.0
    %922 = vmatpush1.msra.mxu0 0.0
    %923 = vmatprep.subr.mxu0 0.0
    %924 = vmatpush1.msra.mxu0 0.0
    %925 = vmatprep.subr.mxu0 0.0
    %926 = vmatpush1.msra.mxu0 0.0
    %927 = vmatprep.subr.mxu0 0.0
    %928 = vmatpush1.msra.mxu0 0.0
    %929 = vmatprep.subr.mxu0 0.0
    %930 = vmatpush1.msra.mxu0 0.0
    %931 = vmatprep.subr.mxu0 0.0
    %932 = vmatpush1.msra.mxu0 0.0
    %933 = vmatprep.subr.mxu0 0.0
    %934 = vmatpush1.msra.mxu0 0.0
    %935 = vmatprep.subr.mxu0 0.0
    %936 = vmatpush1.msra.mxu0 0.0
    %937 = vmatprep.subr.mxu0 0.0
    %938 = vmatpush1.msra.mxu0 0.0
    %939 = vmatprep.subr.mxu0 0.0
    %940 = vmatpush1.msra.mxu0 0.0
    %941 = vmatprep.subr.mxu0 0.0
    %942 = vmatpush1.msra.mxu0 0.0
    %943 = vmatprep.subr.mxu0 0.0
    %944 = vmatpush1.msra.mxu0 0.0
    %945 = vmatprep.subr.mxu0 0.0
    %946 = vmatpush1.msra.mxu0 0.0
    %947 = vmatprep.subr.mxu0 0.0
    %948 = vmatpush1.msra.mxu0 0.0
    %949 = vmatprep.subr.mxu0 0.0
    %950 = vmatpush1.msra.mxu0 0.0
    %951 = vmatprep.subr.mxu0 0.0
    %952 = vmatpush1.msra.mxu0 0.0
    %953 = vmatprep.subr.mxu0 0.0
    %954 = vmatpush1.msra.mxu0 0.0
    %955 = vmatprep.subr.mxu0 0.0
    %956 = vmatpush1.msra.mxu0 0.0
    %957 = vmatprep.mubr.f32.mxu0 0.0
    %958 = vmatmul.mubr.f32.gmra.mrb[0].mxu0 %v891
    %v959 = vpop.f32.mrb[0].mxu0
    %v960 = vadd.f32 %v885, %v959
    %v961 = vpop.f32.mrb[0].mxu0
    %962 = vdwg.mxu0
    %v963 = vadd.f32 %v960, %v175
    %v964 = vxor.u32 %v963, 2147483648
    %v965 = vmul.f32 %v964, 1.442695
    %v966 = vpow.pop %v965
    %v967 = vadd.f32 %v966, 1.0
    %v968 = vrcp.pop %v967
    %v969 = vmul.f32 1.0, %v968
    %v970 = vtanh.pop %v963
    %v971 = vmul.f32 %v969, %v710
    %973 = vrot.lane.b32.xlu0 %v970, 32
    %v974 = vpop.permute.xlu0 %973
    %v976 = vmul.f32 %v969, %v974
    %978 = vrot.lane.b32.xlu0 %v976, 32
    %v979 = vpop.permute.xlu0 %978
    %v981 = vadd.f32 %v971, %v979
    %v982 = vtanh.pop %v981
    %984 = vrot.lane.b32.xlu0 %v982, 32
    %v985 = vpop.permute.xlu0 %984
    %v987 = vmul.f32 %v969, %v985
    %v988 = vrot.slane %v150, 6
    %990 = vmatprep.subr.mxu0 0.0
    %991 = vmatpush1.msra.mxu0 %v158
    %992 = vmatprep.subr.mxu0 0.0
    %993 = vmatpush1.msra.mxu0 %v159
    %994 = vmatprep.subr.mxu0 0.0
    %995 = vmatpush1.msra.mxu0 %v160
    %996 = vmatprep.subr.mxu0 0.0
    %997 = vmatpush1.msra.mxu0 %v161
    %998 = vmatprep.subr.mxu0 0.0
    %999 = vmatpush1.msra.mxu0 0.0
    %1000 = vmatprep.subr.mxu0 0.0
    %1001 = vmatpush1.msra.mxu0 0.0
    %1002 = vmatprep.subr.mxu0 0.0
    %1003 = vmatpush1.msra.mxu0 0.0
    %1004 = vmatprep.subr.mxu0 0.0
    %1005 = vmatpush1.msra.mxu0 0.0
    %1006 = vmatprep.subr.mxu0 0.0
    %1007 = vmatpush1.msra.mxu0 0.0
    %1008 = vmatprep.subr.mxu0 0.0
    %1009 = vmatpush1.msra.mxu0 0.0
    %1010 = vmatprep.subr.mxu0 0.0
    %1011 = vmatpush1.msra.mxu0 0.0
    %1012 = vmatprep.subr.mxu0 0.0
    %1013 = vmatpush1.msra.mxu0 0.0
    %1014 = vmatprep.subr.mxu0 0.0
    %1015 = vmatpush1.msra.mxu0 0.0
    %1016 = vmatprep.subr.mxu0 0.0
    %1017 = vmatpush1.msra.mxu0 0.0
    %1018 = vmatprep.subr.mxu0 0.0
    %1019 = vmatpush1.msra.mxu0 0.0
    %1020 = vmatprep.subr.mxu0 0.0
    %1021 = vmatpush1.msra.mxu0 0.0
    %1022 = vmatprep.subr.mxu0 0.0
    %1023 = vmatpush1.msra.mxu0 0.0
    %1024 = vmatprep.subr.mxu0 0.0
    %1025 = vmatpush1.msra.mxu0 0.0
    %1026 = vmatprep.subr.mxu0 0.0
    %1027 = vmatpush1.msra.mxu0 0.0
    %1028 = vmatprep.subr.mxu0 0.0
    %1029 = vmatpush1.msra.mxu0 0.0
    %1030 = vmatprep.subr.mxu0 0.0
    %1031 = vmatpush1.msra.mxu0 0.0
    %1032 = vmatprep.subr.mxu0 0.0
    %1033 = vmatpush1.msra.mxu0 0.0
    %1034 = vmatprep.subr.mxu0 0.0
    %1035 = vmatpush1.msra.mxu0 0.0
    %1036 = vmatprep.subr.mxu0 0.0
    %1037 = vmatpush1.msra.mxu0 0.0
    %1038 = vmatprep.subr.mxu0 0.0
    %1039 = vmatpush1.msra.mxu0 0.0
    %1040 = vmatprep.subr.mxu0 0.0
    %1041 = vmatpush1.msra.mxu0 0.0
    %1042 = vmatprep.subr.mxu0 0.0
    %1043 = vmatpush1.msra.mxu0 0.0
    %1044 = vmatprep.subr.mxu0 0.0
    %1045 = vmatpush1.msra.mxu0 0.0
    %1046 = vmatprep.subr.mxu0 0.0
    %1047 = vmatpush1.msra.mxu0 0.0
    %1048 = vmatprep.subr.mxu0 0.0
    %1049 = vmatpush1.msra.mxu0 0.0
    %1050 = vmatprep.subr.mxu0 0.0
    %1051 = vmatpush1.msra.mxu0 0.0
    %1052 = vmatprep.subr.mxu0 0.0
    %1053 = vmatpush1.msra.mxu0 0.0
    %1054 = vmatprep.mubr.f32.mxu0 0.0
    %1055 = vmatmul.mubr.f32.gmra.mrb[0].mxu0 %v891
    %v1056 = vpop.f32.mrb[0].mxu0
    %v1057 = vadd.f32 %v988, %v1056
    %v1058 = vpop.f32.mrb[0].mxu0
    %1059 = vdwg.mxu0
    %v1060 = vxor.u32 %v1057, 2147483648
    %v1061 = vmul.f32 %v1060, 1.442695
    %v1062 = vpow.pop %v1061
    %v1063 = vadd.f32 %v1062, 1.0
    %v1064 = vrcp.pop %v1063
    %v1065 = vmul.f32 1.0, %v1064
    %v1066 = vtanh.pop %v1057
    %v1067 = vmul.f32 %v1065, %v806
    %1069 = vrot.lane.b32.xlu0 %v1066, 32
    %v1070 = vpop.permute.xlu0 %1069
    %v1072 = vmul.f32 %v1065, %v1070
    %1074 = vrot.lane.b32.xlu0 %v1072, 32
    %v1075 = vpop.permute.xlu0 %1074
    %v1077 = vadd.f32 %v1067, %v1075
    %v1078 = vtanh.pop %v1077
    %1080 = vrot.lane.b32.xlu0 %v1078, 32
    %v1081 = vpop.permute.xlu0 %1080
    %v1083 = vmul.f32 %v1065, %v1081
    %1085 = vrot.lane.b32.xlu0 %v987, 64
    %v1086 = vpop.permute.xlu0 %1085
    %v1087 = vsel %vm177, %v1086, 0
    %1089 = vmatprep.subr.mxu0 0.0
    %1090 = vmatpush1.msra.mxu0 %v166
    %1091 = vmatprep.subr.mxu0 0.0
    %1092 = vmatpush1.msra.mxu0 %v167
    %1093 = vmatprep.subr.mxu0 0.0
    %1094 = vmatpush1.msra.mxu0 %v168
    %1095 = vmatprep.subr.mxu0 0.0
    %1096 = vmatpush1.msra.mxu0 %v169
    %1097 = vmatprep.subr.mxu0 0.0
    %1098 = vmatpush1.msra.mxu0 0.0
    %1099 = vmatprep.subr.mxu0 0.0
    %1100 = vmatpush1.msra.mxu0 0.0
    %1101 = vmatprep.subr.mxu0 0.0
    %1102 = vmatpush1.msra.mxu0 0.0
    %1103 = vmatprep.subr.mxu0 0.0
    %1104 = vmatpush1.msra.mxu0 0.0
    %1105 = vmatprep.subr.mxu0 0.0
    %1106 = vmatpush1.msra.mxu0 0.0
    %1107 = vmatprep.subr.mxu0 0.0
    %1108 = vmatpush1.msra.mxu0 0.0
    %1109 = vmatprep.subr.mxu0 0.0
    %1110 = vmatpush1.msra.mxu0 0.0
    %1111 = vmatprep.subr.mxu0 0.0
    %1112 = vmatpush1.msra.mxu0 0.0
    %1113 = vmatprep.subr.mxu0 0.0
    %1114 = vmatpush1.msra.mxu0 0.0
    %1115 = vmatprep.subr.mxu0 0.0
    %1116 = vmatpush1.msra.mxu0 0.0
    %1117 = vmatprep.subr.mxu0 0.0
    %1118 = vmatpush1.msra.mxu0 0.0
    %1119 = vmatprep.subr.mxu0 0.0
    %1120 = vmatpush1.msra.mxu0 0.0
    %1121 = vmatprep.subr.mxu0 0.0
    %1122 = vmatpush1.msra.mxu0 0.0
    %1123 = vmatprep.subr.mxu0 0.0
    %1124 = vmatpush1.msra.mxu0 0.0
    %1125 = vmatprep.subr.mxu0 0.0
    %1126 = vmatpush1.msra.mxu0 0.0
    %1127 = vmatprep.subr.mxu0 0.0
    %1128 = vmatpush1.msra.mxu0 0.0
    %1129 = vmatprep.subr.mxu0 0.0
    %1130 = vmatpush1.msra.mxu0 0.0
    %1131 = vmatprep.subr.mxu0 0.0
    %1132 = vmatpush1.msra.mxu0 0.0
    %1133 = vmatprep.subr.mxu0 0.0
    %1134 = vmatpush1.msra.mxu0 0.0
    %1135 = vmatprep.subr.mxu0 0.0
    %1136 = vmatpush1.msra.mxu0 0.0
    %1137 = vmatprep.subr.mxu0 0.0
    %1138 = vmatpush1.msra.mxu0 0.0
    %1139 = vmatprep.subr.mxu0 0.0
    %1140 = vmatpush1.msra.mxu0 0.0
    %1141 = vmatprep.subr.mxu0 0.0
    %1142 = vmatpush1.msra.mxu0 0.0
    %1143 = vmatprep.subr.mxu0 0.0
    %1144 = vmatpush1.msra.mxu0 0.0
    %1145 = vmatprep.subr.mxu0 0.0
    %1146 = vmatpush1.msra.mxu0 0.0
    %1147 = vmatprep.subr.mxu0 0.0
    %1148 = vmatpush1.msra.mxu0 0.0
    %1149 = vmatprep.subr.mxu0 0.0
    %1150 = vmatpush1.msra.mxu0 0.0
    %1151 = vmatprep.subr.mxu0 0.0
    %1152 = vmatpush1.msra.mxu0 0.0
    %1153 = vmatprep.mubr.f32.mxu0 0.0
    %1154 = vmatmul.mubr.f32.gmra.mrb[0].mxu0 %v1087
    %v1155 = vpop.f32.mrb[0].mxu0
    %v1156 = vadd.f32 0.0, %v1155
    %v1157 = vpop.f32.mrb[0].mxu0
    %1158 = vdwg.mxu0
    %1160 = vrot.lane.b32.xlu0 %v1083, 64
    %v1161 = vpop.permute.xlu0 %1160
    %v1162 = vsel %vm177, %v1161, 0
    %1164 = vmatprep.subr.mxu0 0.0
    %1165 = vmatpush1.msra.mxu0 %v162
    %1166 = vmatprep.subr.mxu0 0.0
    %1167 = vmatpush1.msra.mxu0 %v163
    %1168 = vmatprep.subr.mxu0 0.0
    %1169 = vmatpush1.msra.mxu0 %v164
    %1170 = vmatprep.subr.mxu0 0.0
    %1171 = vmatpush1.msra.mxu0 %v165
    %1172 = vmatprep.subr.mxu0 0.0
    %1173 = vmatpush1.msra.mxu0 0.0
    %1174 = vmatprep.subr.mxu0 0.0
    %1175 = vmatpush1.msra.mxu0 0.0
    %1176 = vmatprep.subr.mxu0 0.0
    %1177 = vmatpush1.msra.mxu0 0.0
    %1178 = vmatprep.subr.mxu0 0.0
    %1179 = vmatpush1.msra.mxu0 0.0
    %1180 = vmatprep.subr.mxu0 0.0
    %1181 = vmatpush1.msra.mxu0 0.0
    %1182 = vmatprep.subr.mxu0 0.0
    %1183 = vmatpush1.msra.mxu0 0.0
    %1184 = vmatprep.subr.mxu0 0.0
    %1185 = vmatpush1.msra.mxu0 0.0
    %1186 = vmatprep.subr.mxu0 0.0
    %1187 = vmatpush1.msra.mxu0 0.0
    %1188 = vmatprep.subr.mxu0 0.0
    %1189 = vmatpush1.msra.mxu0 0.0
    %1190 = vmatprep.subr.mxu0 0.0
    %1191 = vmatpush1.msra.mxu0 0.0
    %1192 = vmatprep.subr.mxu0 0.0
    %1193 = vmatpush1.msra.mxu0 0.0
    %1194 = vmatprep.subr.mxu0 0.0
    %1195 = vmatpush1.msra.mxu0 0.0
    %1196 = vmatprep.subr.mxu0 0.0
    %1197 = vmatpush1.msra.mxu0 0.0
    %1198 = vmatprep.subr.mxu0 0.0
    %1199 = vmatpush1.msra.mxu0 0.0
    %1200 = vmatprep.subr.mxu0 0.0
    %1201 = vmatpush1.msra.mxu0 0.0
    %1202 = vmatprep.subr.mxu0 0.0
    %1203 = vmatpush1.msra.mxu0 0.0
    %1204 = vmatprep.subr.mxu0 0.0
    %1205 = vmatpush1.msra.mxu0 0.0
    %1206 = vmatprep.subr.mxu0 0.0
    %1207 = vmatpush1.msra.mxu0 0.0
    %1208 = vmatprep.subr.mxu0 0.0
    %1209 = vmatpush1.msra.mxu0 0.0
    %1210 = vmatprep.subr.mxu0 0.0
    %1211 = vmatpush1.msra.mxu0 0.0
    %1212 = vmatprep.subr.mxu0 0.0
    %1213 = vmatpush1.msra.mxu0 0.0
    %1214 = vmatprep.subr.mxu0 0.0
    %1215 = vmatpush1.msra.mxu0 0.0
    %1216 = vmatprep.subr.mxu0 0.0
    %1217 = vmatpush1.msra.mxu0 0.0
    %1218 = vmatprep.subr.mxu0 0.0
    %1219 = vmatpush1.msra.mxu0 0.0
    %1220 = vmatprep.subr.mxu0 0.0
    %1221 = vmatpush1.msra.mxu0 0.0
    %1222 = vmatprep.subr.mxu0 0.0
    %1223 = vmatpush1.msra.mxu0 0.0
    %1224 = vmatprep.subr.mxu0 0.0
    %1225 = vmatpush1.msra.mxu0 0.0
    %1226 = vmatprep.subr.mxu0 0.0
    %1227 = vmatpush1.msra.mxu0 0.0
    %1228 = vmatprep.mubr.f32.mxu0 0.0
    %1229 = vmatmul.mubr.f32.gmra.mrb[0].mxu0 %v1162
    %v1230 = vpop.f32.mrb[0].mxu0
    %v1231 = vadd.f32 %v1156, %v1230
    %v1232 = vpop.f32.mrb[0].mxu0
    %1233 = vdwg.mxu0
    %v1234 = vadd.f32 %v1231, %v175
    %v1235 = vxor.u32 %v1234, 2147483648
    %v1236 = vmul.f32 %v1235, 1.442695
    %v1237 = vpow.pop %v1236
    %v1238 = vadd.f32 %v1237, 1.0
    %v1239 = vrcp.pop %v1238
    %v1240 = vmul.f32 1.0, %v1239
    %v1241 = vtanh.pop %v1234
    %v1242 = vmul.f32 %v1240, %v981
    %1244 = vrot.lane.b32.xlu0 %v1241, 32
    %v1245 = vpop.permute.xlu0 %1244
    %v1247 = vmul.f32 %v1240, %v1245
    %1249 = vrot.lane.b32.xlu0 %v1247, 32
    %v1250 = vpop.permute.xlu0 %1249
    %v1252 = vadd.f32 %v1242, %v1250
    %v1253 = vtanh.pop %v1252
    %1255 = vrot.lane.b32.xlu0 %v1253, 32
    %v1256 = vpop.permute.xlu0 %1255
    %v1258 = vmul.f32 %v1240, %v1256
    %1259 = vmatprep.subr.mxu0 0.0
    %1260 = vmatpush1.msra.mxu0 %v158
    %1261 = vmatprep.subr.mxu0 0.0
    %1262 = vmatpush1.msra.mxu0 %v159
    %1263 = vmatprep.subr.mxu0 0.0
    %1264 = vmatpush1.msra.mxu0 %v160
    %1265 = vmatprep.subr.mxu0 0.0
    %1266 = vmatpush1.msra.mxu0 %v161
    %1267 = vmatprep.subr.mxu0 0.0
    %1268 = vmatpush1.msra.mxu0 0.0
    %1269 = vmatprep.subr.mxu0 0.0
    %1270 = vmatpush1.msra.mxu0 0.0
    %1271 = vmatprep.subr.mxu0 0.0
    %1272 = vmatpush1.msra.mxu0 0.0
    %1273 = vmatprep.subr.mxu0 0.0
    %1274 = vmatpush1.msra.mxu0 0.0
    %1275 = vmatprep.subr.mxu0 0.0
    %1276 = vmatpush1.msra.mxu0 0.0
    %1277 = vmatprep.subr.mxu0 0.0
    %1278 = vmatpush1.msra.mxu0 0.0
    %1279 = vmatprep.subr.mxu0 0.0
    %1280 = vmatpush1.msra.mxu0 0.0
    %1281 = vmatprep.subr.mxu0 0.0
    %1282 = vmatpush1.msra.mxu0 0.0
    %1283 = vmatprep.subr.mxu0 0.0
    %1284 = vmatpush1.msra.mxu0 0.0
    %1285 = vmatprep.subr.mxu0 0.0
    %1286 = vmatpush1.msra.mxu0 0.0
    %1287 = vmatprep.subr.mxu0 0.0
    %1288 = vmatpush1.msra.mxu0 0.0
    %1289 = vmatprep.subr.mxu0 0.0
    %1290 = vmatpush1.msra.mxu0 0.0
    %1291 = vmatprep.subr.mxu0 0.0
    %1292 = vmatpush1.msra.mxu0 0.0
    %1293 = vmatprep.subr.mxu0 0.0
    %1294 = vmatpush1.msra.mxu0 0.0
    %1295 = vmatprep.subr.mxu0 0.0
    %1296 = vmatpush1.msra.mxu0 0.0
    %1297 = vmatprep.subr.mxu0 0.0
    %1298 = vmatpush1.msra.mxu0 0.0
    %1299 = vmatprep.subr.mxu0 0.0
    %1300 = vmatpush1.msra.mxu0 0.0
    %1301 = vmatprep.subr.mxu0 0.0
    %1302 = vmatpush1.msra.mxu0 0.0
    %1303 = vmatprep.subr.mxu0 0.0
    %1304 = vmatpush1.msra.mxu0 0.0
    %1305 = vmatprep.subr.mxu0 0.0
    %1306 = vmatpush1.msra.mxu0 0.0
    %1307 = vmatprep.subr.mxu0 0.0
    %1308 = vmatpush1.msra.mxu0 0.0
    %1309 = vmatprep.subr.mxu0 0.0
    %1310 = vmatpush1.msra.mxu0 0.0
    %1311 = vmatprep.subr.mxu0 0.0
    %1312 = vmatpush1.msra.mxu0 0.0
    %1313 = vmatprep.subr.mxu0 0.0
    %1314 = vmatpush1.msra.mxu0 0.0
    %1315 = vmatprep.subr.mxu0 0.0
    %1316 = vmatpush1.msra.mxu0 0.0
    %1317 = vmatprep.subr.mxu0 0.0
    %1318 = vmatpush1.msra.mxu0 0.0
    %1319 = vmatprep.subr.mxu0 0.0
    %1320 = vmatpush1.msra.mxu0 0.0
    %1321 = vmatprep.subr.mxu0 0.0
    %1322 = vmatpush1.msra.mxu0 0.0
    %1323 = vmatprep.mubr.f32.mxu0 0.0
    %1324 = vmatmul.mubr.f32.gmra.mrb[0].mxu0 %v1162
    %v1325 = vpop.f32.mrb[0].mxu0
    %v1326 = vadd.f32 %v155, %v1325
    %v1327 = vpop.f32.mrb[0].mxu0
    %1328 = vdwg.mxu0
    %v1329 = vxor.u32 %v1326, 2147483648
    %v1330 = vmul.f32 %v1329, 1.442695
    %v1331 = vpow.pop %v1330
    %v1332 = vadd.f32 %v1331, 1.0
    %v1333 = vrcp.pop %v1332
    %v1334 = vmul.f32 1.0, %v1333
    %v1335 = vtanh.pop %v1326
    %v1336 = vmul.f32 %v1334, %v1077
    %1338 = vrot.lane.b32.xlu0 %v1335, 32
    %v1339 = vpop.permute.xlu0 %1338
    %v1341 = vmul.f32 %v1334, %v1339
    %1343 = vrot.lane.b32.xlu0 %v1341, 32
    %v1344 = vpop.permute.xlu0 %1343
    %v1346 = vadd.f32 %v1336, %v1344
    %v1347 = vtanh.pop %v1346
    %1349 = vrot.lane.b32.xlu0 %v1347, 32
    %v1350 = vpop.permute.xlu0 %1349
    %v1352 = vmul.f32 %v1334, %v1350
    %1354 = vrot.lane.b32.xlu0 %v1258, 64
    %v1355 = vpop.permute.xlu0 %1354
    %v1356 = vsel %vm177, %v1355, 0
    %1358 = vmatprep.subr.mxu0 0.0
    %1359 = vmatpush1.msra.mxu0 %v166
    %1360 = vmatprep.subr.mxu0 0.0
    %1361 = vmatpush1.msra.mxu0 %v167
    %1362 = vmatprep.subr.mxu0 0.0
    %1363 = vmatpush1.msra.mxu0 %v168
    %1364 = vmatprep.subr.mxu0 0.0
    %1365 = vmatpush1.msra.mxu0 %v169
    %1366 = vmatprep.subr.mxu0 0.0
    %1367 = vmatpush1.msra.mxu0 0.0
    %1368 = vmatprep.subr.mxu0 0.0
    %1369 = vmatpush1.msra.mxu0 0.0
    %1370 = vmatprep.subr.mxu0 0.0
    %1371 = vmatpush1.msra.mxu0 0.0
    %1372 = vmatprep.subr.mxu0 0.0
    %1373 = vmatpush1.msra.mxu0 0.0
    %1374 = vmatprep.subr.mxu0 0.0
    %1375 = vmatpush1.msra.mxu0 0.0
    %1376 = vmatprep.subr.mxu0 0.0
    %1377 = vmatpush1.msra.mxu0 0.0
    %1378 = vmatprep.subr.mxu0 0.0
    %1379 = vmatpush1.msra.mxu0 0.0
    %1380 = vmatprep.subr.mxu0 0.0
    %1381 = vmatpush1.msra.mxu0 0.0
    %1382 = vmatprep.subr.mxu0 0.0
    %1383 = vmatpush1.msra.mxu0 0.0
    %1384 = vmatprep.subr.mxu0 0.0
    %1385 = vmatpush1.msra.mxu0 0.0
    %1386 = vmatprep.subr.mxu0 0.0
    %1387 = vmatpush1.msra.mxu0 0.0
    %1388 = vmatprep.subr.mxu0 0.0
    %1389 = vmatpush1.msra.mxu0 0.0
    %1390 = vmatprep.subr.mxu0 0.0
    %1391 = vmatpush1.msra.mxu0 0.0
    %1392 = vmatprep.subr.mxu0 0.0
    %1393 = vmatpush1.msra.mxu0 0.0
    %1394 = vmatprep.subr.mxu0 0.0
    %1395 = vmatpush1.msra.mxu0 0.0
    %1396 = vmatprep.subr.mxu0 0.0
    %1397 = vmatpush1.msra.mxu0 0.0
    %1398 = vmatprep.subr.mxu0 0.0
    %1399 = vmatpush1.msra.mxu0 0.0
    %1400 = vmatprep.subr.mxu0 0.0
    %1401 = vmatpush1.msra.mxu0 0.0
    %1402 = vmatprep.subr.mxu0 0.0
    %1403 = vmatpush1.msra.mxu0 0.0
    %1404 = vmatprep.subr.mxu0 0.0
    %1405 = vmatpush1.msra.mxu0 0.0
    %1406 = vmatprep.subr.mxu0 0.0
    %1407 = vmatpush1.msra.mxu0 0.0
    %1408 = vmatprep.subr.mxu0 0.0
    %1409 = vmatpush1.msra.mxu0 0.0
    %1410 = vmatprep.subr.mxu0 0.0
    %1411 = vmatpush1.msra.mxu0 0.0
    %1412 = vmatprep.subr.mxu0 0.0
    %1413 = vmatpush1.msra.mxu0 0.0
    %1414 = vmatprep.subr.mxu0 0.0
    %1415 = vmatpush1.msra.mxu0 0.0
    %1416 = vmatprep.subr.mxu0 0.0
    %1417 = vmatpush1.msra.mxu0 0.0
    %1418 = vmatprep.subr.mxu0 0.0
    %1419 = vmatpush1.msra.mxu0 0.0
    %1420 = vmatprep.subr.mxu0 0.0
    %1421 = vmatpush1.msra.mxu0 0.0
    %1422 = vmatprep.mubr.f32.mxu0 0.0
    %1423 = vmatmul.mubr.f32.gmra.mrb[0].mxu0 %v1356
    %v1424 = vpop.f32.mrb[0].mxu0
    %v1425 = vadd.f32 0.0, %v1424
    %v1426 = vpop.f32.mrb[0].mxu0
    %1427 = vdwg.mxu0
    %1429 = vrot.lane.b32.xlu0 %v1352, 64
    %v1430 = vpop.permute.xlu0 %1429
    %v1431 = vsel %vm177, %v1430, 0
    %1433 = vmatprep.subr.mxu0 0.0
    %1434 = vmatpush1.msra.mxu0 %v162
    %1435 = vmatprep.subr.mxu0 0.0
    %1436 = vmatpush1.msra.mxu0 %v163
    %1437 = vmatprep.subr.mxu0 0.0
    %1438 = vmatpush1.msra.mxu0 %v164
    %1439 = vmatprep.subr.mxu0 0.0
    %1440 = vmatpush1.msra.mxu0 %v165
    %1441 = vmatprep.subr.mxu0 0.0
    %1442 = vmatpush1.msra.mxu0 0.0
    %1443 = vmatprep.subr.mxu0 0.0
    %1444 = vmatpush1.msra.mxu0 0.0
    %1445 = vmatprep.subr.mxu0 0.0
    %1446 = vmatpush1.msra.mxu0 0.0
    %1447 = vmatprep.subr.mxu0 0.0
    %1448 = vmatpush1.msra.mxu0 0.0
    %1449 = vmatprep.subr.mxu0 0.0
    %1450 = vmatpush1.msra.mxu0 0.0
    %1451 = vmatprep.subr.mxu0 0.0
    %1452 = vmatpush1.msra.mxu0 0.0
    %1453 = vmatprep.subr.mxu0 0.0
    %1454 = vmatpush1.msra.mxu0 0.0
    %1455 = vmatprep.subr.mxu0 0.0
    %1456 = vmatpush1.msra.mxu0 0.0
    %1457 = vmatprep.subr.mxu0 0.0
    %1458 = vmatpush1.msra.mxu0 0.0
    %1459 = vmatprep.subr.mxu0 0.0
    %1460 = vmatpush1.msra.mxu0 0.0
    %1461 = vmatprep.subr.mxu0 0.0
    %1462 = vmatpush1.msra.mxu0 0.0
    %1463 = vmatprep.subr.mxu0 0.0
    %1464 = vmatpush1.msra.mxu0 0.0
    %1465 = vmatprep.subr.mxu0 0.0
    %1466 = vmatpush1.msra.mxu0 0.0
    %1467 = vmatprep.subr.mxu0 0.0
    %1468 = vmatpush1.msra.mxu0 0.0
    %1469 = vmatprep.subr.mxu0 0.0
    %1470 = vmatpush1.msra.mxu0 0.0
    %1471 = vmatprep.subr.mxu0 0.0
    %1472 = vmatpush1.msra.mxu0 0.0
    %1473 = vmatprep.subr.mxu0 0.0
    %1474 = vmatpush1.msra.mxu0 0.0
    %1475 = vmatprep.subr.mxu0 0.0
    %1476 = vmatpush1.msra.mxu0 0.0
    %1477 = vmatprep.subr.mxu0 0.0
    %1478 = vmatpush1.msra.mxu0 0.0
    %1479 = vmatprep.subr.mxu0 0.0
    %1480 = vmatpush1.msra.mxu0 0.0
    %1481 = vmatprep.subr.mxu0 0.0
    %1482 = vmatpush1.msra.mxu0 0.0
    %1483 = vmatprep.subr.mxu0 0.0
    %1484 = vmatpush1.msra.mxu0 0.0
    %1485 = vmatprep.subr.mxu0 0.0
    %1486 = vmatpush1.msra.mxu0 0.0
    %1487 = vmatprep.subr.mxu0 0.0
    %1488 = vmatpush1.msra.mxu0 0.0
    %1489 = vmatprep.subr.mxu0 0.0
    %1490 = vmatpush1.msra.mxu0 0.0
    %1491 = vmatprep.subr.mxu0 0.0
    %1492 = vmatpush1.msra.mxu0 0.0
    %1493 = vmatprep.subr.mxu0 0.0
    %1494 = vmatpush1.msra.mxu0 0.0
    %1495 = vmatprep.subr.mxu0 0.0
    %1496 = vmatpush1.msra.mxu0 0.0
    %1497 = vmatprep.mubr.f32.mxu0 0.0
    %1498 = vmatmul.mubr.f32.gmra.mrb[0].mxu0 %v1431
    %v1499 = vpop.f32.mrb[0].mxu0
    %v1500 = vadd.f32 %v1425, %v1499
    %v1501 = vpop.f32.mrb[0].mxu0
    %1502 = vdwg.mxu0
    %v1503 = vadd.f32 %v1500, %v175
    %v1504 = vxor.u32 %v1503, 2147483648
    %v1505 = vmul.f32 %v1504, 1.442695
    %v1506 = vpow.pop %v1505
    %v1507 = vadd.f32 %v1506, 1.0
    %v1508 = vrcp.pop %v1507
    %v1509 = vmul.f32 1.0, %v1508
    %v1510 = vtanh.pop %v1503
    %v1511 = vmul.f32 %v1509, %v1252
    %1513 = vrot.lane.b32.xlu0 %v1510, 32
    %v1514 = vpop.permute.xlu0 %1513
    %v1516 = vmul.f32 %v1509, %v1514
    %1518 = vrot.lane.b32.xlu0 %v1516, 32
    %v1519 = vpop.permute.xlu0 %1518
    %v1521 = vadd.f32 %v1511, %v1519
    %v1522 = vtanh.pop %v1521
    %1524 = vrot.lane.b32.xlu0 %v1522, 32
    %v1525 = vpop.permute.xlu0 %1524
    %v1527 = vmul.f32 %v1509, %v1525
    %v1529 = vrot.slane %v155, 2
    %1531 = vmatprep.subr.mxu0 0.0
    %1532 = vmatpush1.msra.mxu0 %v158
    %1533 = vmatprep.subr.mxu0 0.0
    %1534 = vmatpush1.msra.mxu0 %v159
    %1535 = vmatprep.subr.mxu0 0.0
    %1536 = vmatpush1.msra.mxu0 %v160
    %1537 = vmatprep.subr.mxu0 0.0
    %1538 = vmatpush1.msra.mxu0 %v161
    %1539 = vmatprep.subr.mxu0 0.0
    %1540 = vmatpush1.msra.mxu0 0.0
    %1541 = vmatprep.subr.mxu0 0.0
    %1542 = vmatpush1.msra.mxu0 0.0
    %1543 = vmatprep.subr.mxu0 0.0
    %1544 = vmatpush1.msra.mxu0 0.0
    %1545 = vmatprep.subr.mxu0 0.0
    %1546 = vmatpush1.msra.mxu0 0.0
    %1547 = vmatprep.subr.mxu0 0.0
    %1548 = vmatpush1.msra.mxu0 0.0
    %1549 = vmatprep.subr.mxu0 0.0
    %1550 = vmatpush1.msra.mxu0 0.0
    %1551 = vmatprep.subr.mxu0 0.0
    %1552 = vmatpush1.msra.mxu0 0.0
    %1553 = vmatprep.subr.mxu0 0.0
    %1554 = vmatpush1.msra.mxu0 0.0
    %1555 = vmatprep.subr.mxu0 0.0
    %1556 = vmatpush1.msra.mxu0 0.0
    %1557 = vmatprep.subr.mxu0 0.0
    %1558 = vmatpush1.msra.mxu0 0.0
    %1559 = vmatprep.subr.mxu0 0.0
    %1560 = vmatpush1.msra.mxu0 0.0
    %1561 = vmatprep.subr.mxu0 0.0
    %1562 = vmatpush1.msra.mxu0 0.0
    %1563 = vmatprep.subr.mxu0 0.0
    %1564 = vmatpush1.msra.mxu0 0.0
    %1565 = vmatprep.subr.mxu0 0.0
    %1566 = vmatpush1.msra.mxu0 0.0
    %1567 = vmatprep.subr.mxu0 0.0
    %1568 = vmatpush1.msra.mxu0 0.0
    %1569 = vmatprep.subr.mxu0 0.0
    %1570 = vmatpush1.msra.mxu0 0.0
    %1571 = vmatprep.subr.mxu0 0.0
    %1572 = vmatpush1.msra.mxu0 0.0
    %1573 = vmatprep.subr.mxu0 0.0
    %1574 = vmatpush1.msra.mxu0 0.0
    %1575 = vmatprep.subr.mxu0 0.0
    %1576 = vmatpush1.msra.mxu0 0.0
    %1577 = vmatprep.subr.mxu0 0.0
    %1578 = vmatpush1.msra.mxu0 0.0
    %1579 = vmatprep.subr.mxu0 0.0
    %1580 = vmatpush1.msra.mxu0 0.0
    %1581 = vmatprep.subr.mxu0 0.0
    %1582 = vmatpush1.msra.mxu0 0.0
    %1583 = vmatprep.subr.mxu0 0.0
    %1584 = vmatpush1.msra.mxu0 0.0
    %1585 = vmatprep.subr.mxu0 0.0
    %1586 = vmatpush1.msra.mxu0 0.0
    %1587 = vmatprep.subr.mxu0 0.0
    %1588 = vmatpush1.msra.mxu0 0.0
    %1589 = vmatprep.subr.mxu0 0.0
    %1590 = vmatpush1.msra.mxu0 0.0
    %1591 = vmatprep.subr.mxu0 0.0
    %1592 = vmatpush1.msra.mxu0 0.0
    %1593 = vmatprep.subr.mxu0 0.0
    %1594 = vmatpush1.msra.mxu0 0.0
    %1595 = vmatprep.mubr.f32.mxu0 0.0
    %1596 = vmatmul.mubr.f32.gmra.mrb[0].mxu0 %v1431
    %v1597 = vpop.f32.mrb[0].mxu0
    %v1598 = vadd.f32 %v1529, %v1597
    %v1599 = vpop.f32.mrb[0].mxu0
    %1600 = vdwg.mxu0
    %v1601 = vxor.u32 %v1598, 2147483648
    %v1602 = vmul.f32 %v1601, 1.442695
    %v1603 = vpow.pop %v1602
    %v1604 = vadd.f32 %v1603, 1.0
    %v1605 = vrcp.pop %v1604
    %v1606 = vmul.f32 1.0, %v1605
    %v1607 = vtanh.pop %v1598
    %v1608 = vmul.f32 %v1606, %v1346
    %1610 = vrot.lane.b32.xlu0 %v1607, 32
    %v1611 = vpop.permute.xlu0 %1610
    %v1613 = vmul.f32 %v1606, %v1611
    %1615 = vrot.lane.b32.xlu0 %v1613, 32
    %v1616 = vpop.permute.xlu0 %1615
    %v1618 = vadd.f32 %v1608, %v1616
    %v1619 = vtanh.pop %v1618
    %1621 = vrot.lane.b32.xlu0 %v1619, 32
    %v1622 = vpop.permute.xlu0 %1621
    %v1624 = vmul.f32 %v1606, %v1622
    %1626 = vrot.lane.b32.xlu0 %v1527, 64
    %v1627 = vpop.permute.xlu0 %1626
    %v1628 = vsel %vm177, %v1627, 0
    %1630 = vmatprep.subr.mxu0 0.0
    %1631 = vmatpush1.msra.mxu0 %v166
    %1632 = vmatprep.subr.mxu0 0.0
    %1633 = vmatpush1.msra.mxu0 %v167
    %1634 = vmatprep.subr.mxu0 0.0
    %1635 = vmatpush1.msra.mxu0 %v168
    %1636 = vmatprep.subr.mxu0 0.0
    %1637 = vmatpush1.msra.mxu0 %v169
    %1638 = vmatprep.subr.mxu0 0.0
    %1639 = vmatpush1.msra.mxu0 0.0
    %1640 = vmatprep.subr.mxu0 0.0
    %1641 = vmatpush1.msra.mxu0 0.0
    %1642 = vmatprep.subr.mxu0 0.0
    %1643 = vmatpush1.msra.mxu0 0.0
    %1644 = vmatprep.subr.mxu0 0.0
    %1645 = vmatpush1.msra.mxu0 0.0
    %1646 = vmatprep.subr.mxu0 0.0
    %1647 = vmatpush1.msra.mxu0 0.0
    %1648 = vmatprep.subr.mxu0 0.0
    %1649 = vmatpush1.msra.mxu0 0.0
    %1650 = vmatprep.subr.mxu0 0.0
    %1651 = vmatpush1.msra.mxu0 0.0
    %1652 = vmatprep.subr.mxu0 0.0
    %1653 = vmatpush1.msra.mxu0 0.0
    %1654 = vmatprep.subr.mxu0 0.0
    %1655 = vmatpush1.msra.mxu0 0.0
    %1656 = vmatprep.subr.mxu0 0.0
    %1657 = vmatpush1.msra.mxu0 0.0
    %1658 = vmatprep.subr.mxu0 0.0
    %1659 = vmatpush1.msra.mxu0 0.0
    %1660 = vmatprep.subr.mxu0 0.0
    %1661 = vmatpush1.msra.mxu0 0.0
    %1662 = vmatprep.subr.mxu0 0.0
    %1663 = vmatpush1.msra.mxu0 0.0
    %1664 = vmatprep.subr.mxu0 0.0
    %1665 = vmatpush1.msra.mxu0 0.0
    %1666 = vmatprep.subr.mxu0 0.0
    %1667 = vmatpush1.msra.mxu0 0.0
    %1668 = vmatprep.subr.mxu0 0.0
    %1669 = vmatpush1.msra.mxu0 0.0
    %1670 = vmatprep.subr.mxu0 0.0
    %1671 = vmatpush1.msra.mxu0 0.0
    %1672 = vmatprep.subr.mxu0 0.0
    %1673 = vmatpush1.msra.mxu0 0.0
    %1674 = vmatprep.subr.mxu0 0.0
    %1675 = vmatpush1.msra.mxu0 0.0
    %1676 = vmatprep.subr.mxu0 0.0
    %1677 = vmatpush1.msra.mxu0 0.0
    %1678 = vmatprep.subr.mxu0 0.0
    %1679 = vmatpush1.msra.mxu0 0.0
    %1680 = vmatprep.subr.mxu0 0.0
    %1681 = vmatpush1.msra.mxu0 0.0
    %1682 = vmatprep.subr.mxu0 0.0
    %1683 = vmatpush1.msra.mxu0 0.0
    %1684 = vmatprep.subr.mxu0 0.0
    %1685 = vmatpush1.msra.mxu0 0.0
    %1686 = vmatprep.subr.mxu0 0.0
    %1687 = vmatpush1.msra.mxu0 0.0
    %1688 = vmatprep.subr.mxu0 0.0
    %1689 = vmatpush1.msra.mxu0 0.0
    %1690 = vmatprep.subr.mxu0 0.0
    %1691 = vmatpush1.msra.mxu0 0.0
    %1692 = vmatprep.subr.mxu0 0.0
    %1693 = vmatpush1.msra.mxu0 0.0
    %1694 = vmatprep.mubr.f32.mxu0 0.0
    %1695 = vmatmul.mubr.f32.gmra.mrb[0].mxu0 %v1628
    %v1696 = vpop.f32.mrb[0].mxu0
    %v1697 = vadd.f32 0.0, %v1696
    %v1698 = vpop.f32.mrb[0].mxu0
    %1699 = vdwg.mxu0
    %1701 = vrot.lane.b32.xlu0 %v1624, 64
    %v1702 = vpop.permute.xlu0 %1701
    %v1703 = vsel %vm177, %v1702, 0
    %1705 = vmatprep.subr.mxu0 0.0
    %1706 = vmatpush1.msra.mxu0 %v162
    %1707 = vmatprep.subr.mxu0 0.0
    %1708 = vmatpush1.msra.mxu0 %v163
    %1709 = vmatprep.subr.mxu0 0.0
    %1710 = vmatpush1.msra.mxu0 %v164
    %1711 = vmatprep.subr.mxu0 0.0
    %1712 = vmatpush1.msra.mxu0 %v165
    %1713 = vmatprep.subr.mxu0 0.0
    %1714 = vmatpush1.msra.mxu0 0.0
    %1715 = vmatprep.subr.mxu0 0.0
    %1716 = vmatpush1.msra.mxu0 0.0
    %1717 = vmatprep.subr.mxu0 0.0
    %1718 = vmatpush1.msra.mxu0 0.0
    %1719 = vmatprep.subr.mxu0 0.0
    %1720 = vmatpush1.msra.mxu0 0.0
    %1721 = vmatprep.subr.mxu0 0.0
    %1722 = vmatpush1.msra.mxu0 0.0
    %1723 = vmatprep.subr.mxu0 0.0
    %1724 = vmatpush1.msra.mxu0 0.0
    %1725 = vmatprep.subr.mxu0 0.0
    %1726 = vmatpush1.msra.mxu0 0.0
    %1727 = vmatprep.subr.mxu0 0.0
    %1728 = vmatpush1.msra.mxu0 0.0
    %1729 = vmatprep.subr.mxu0 0.0
    %1730 = vmatpush1.msra.mxu0 0.0
    %1731 = vmatprep.subr.mxu0 0.0
    %1732 = vmatpush1.msra.mxu0 0.0
    %1733 = vmatprep.subr.mxu0 0.0
    %1734 = vmatpush1.msra.mxu0 0.0
    %1735 = vmatprep.subr.mxu0 0.0
    %1736 = vmatpush1.msra.mxu0 0.0
    %1737 = vmatprep.subr.mxu0 0.0
    %1738 = vmatpush1.msra.mxu0 0.0
    %1739 = vmatprep.subr.mxu0 0.0
    %1740 = vmatpush1.msra.mxu0 0.0
    %1741 = vmatprep.subr.mxu0 0.0
    %1742 = vmatpush1.msra.mxu0 0.0
    %1743 = vmatprep.subr.mxu0 0.0
    %1744 = vmatpush1.msra.mxu0 0.0
    %1745 = vmatprep.subr.mxu0 0.0
    %1746 = vmatpush1.msra.mxu0 0.0
    %1747 = vmatprep.subr.mxu0 0.0
    %1748 = vmatpush1.msra.mxu0 0.0
    %1749 = vmatprep.subr.mxu0 0.0
    %1750 = vmatpush1.msra.mxu0 0.0
    %1751 = vmatprep.subr.mxu0 0.0
    %1752 = vmatpush1.msra.mxu0 0.0
    %1753 = vmatprep.subr.mxu0 0.0
    %1754 = vmatpush1.msra.mxu0 0.0
    %1755 = vmatprep.subr.mxu0 0.0
    %1756 = vmatpush1.msra.mxu0 0.0
    %1757 = vmatprep.subr.mxu0 0.0
    %1758 = vmatpush1.msra.mxu0 0.0
    %1759 = vmatprep.subr.mxu0 0.0
    %1760 = vmatpush1.msra.mxu0 0.0
    %1761 = vmatprep.subr.mxu0 0.0
    %1762 = vmatpush1.msra.mxu0 0.0
    %1763 = vmatprep.subr.mxu0 0.0
    %1764 = vmatpush1.msra.mxu0 0.0
    %1765 = vmatprep.subr.mxu0 0.0
    %1766 = vmatpush1.msra.mxu0 0.0
    %1767 = vmatprep.subr.mxu0 0.0
    %1768 = vmatpush1.msra.mxu0 0.0
    %1769 = vmatprep.mubr.f32.mxu0 0.0
    %1770 = vmatmul.mubr.f32.gmra.mrb[0].mxu0 %v1703
    %v1771 = vpop.f32.mrb[0].mxu0
    %v1772 = vadd.f32 %v1697, %v1771
    %v1773 = vpop.f32.mrb[0].mxu0
    %1774 = vdwg.mxu0
    %v1775 = vadd.f32 %v1772, %v175
    %v1776 = vxor.u32 %v1775, 2147483648
    %v1777 = vmul.f32 %v1776, 1.442695
    %v1778 = vpow.pop %v1777
    %v1779 = vadd.f32 %v1778, 1.0
    %v1780 = vrcp.pop %v1779
    %v1781 = vmul.f32 1.0, %v1780
    %v1782 = vtanh.pop %v1775
    %v1783 = vmul.f32 %v1781, %v1521
    %1785 = vrot.lane.b32.xlu0 %v1782, 32
    %v1786 = vpop.permute.xlu0 %1785
    %v1788 = vmul.f32 %v1781, %v1786
    %1790 = vrot.lane.b32.xlu0 %v1788, 32
    %v1791 = vpop.permute.xlu0 %1790
    %v1793 = vadd.f32 %v1783, %v1791
    %v1794 = vtanh.pop %v1793
    %1796 = vrot.lane.b32.xlu0 %v1794, 32
    %v1797 = vpop.permute.xlu0 %1796
    %v1799 = vmul.f32 %v1781, %v1797
    %v1800 = vrot.slane %v155, 4
    %1802 = vmatprep.subr.mxu0 0.0
    %1803 = vmatpush1.msra.mxu0 %v158
    %1804 = vmatprep.subr.mxu0 0.0
    %1805 = vmatpush1.msra.mxu0 %v159
    %1806 = vmatprep.subr.mxu0 0.0
    %1807 = vmatpush1.msra.mxu0 %v160
    %1808 = vmatprep.subr.mxu0 0.0
    %1809 = vmatpush1.msra.mxu0 %v161
    %1810 = vmatprep.subr.mxu0 0.0
    %1811 = vmatpush1.msra.mxu0 0.0
    %1812 = vmatprep.subr.mxu0 0.0
    %1813 = vmatpush1.msra.mxu0 0.0
    %1814 = vmatprep.subr.mxu0 0.0
    %1815 = vmatpush1.msra.mxu0 0.0
    %1816 = vmatprep.subr.mxu0 0.0
    %1817 = vmatpush1.msra.mxu0 0.0
    %1818 = vmatprep.subr.mxu0 0.0
    %1819 = vmatpush1.msra.mxu0 0.0
    %1820 = vmatprep.subr.mxu0 0.0
    %1821 = vmatpush1.msra.mxu0 0.0
    %1822 = vmatprep.subr.mxu0 0.0
    %1823 = vmatpush1.msra.mxu0 0.0
    %1824 = vmatprep.subr.mxu0 0.0
    %1825 = vmatpush1.msra.mxu0 0.0
    %1826 = vmatprep.subr.mxu0 0.0
    %1827 = vmatpush1.msra.mxu0 0.0
    %1828 = vmatprep.subr.mxu0 0.0
    %1829 = vmatpush1.msra.mxu0 0.0
    %1830 = vmatprep.subr.mxu0 0.0
    %1831 = vmatpush1.msra.mxu0 0.0
    %1832 = vmatprep.subr.mxu0 0.0
    %1833 = vmatpush1.msra.mxu0 0.0
    %1834 = vmatprep.subr.mxu0 0.0
    %1835 = vmatpush1.msra.mxu0 0.0
    %1836 = vmatprep.subr.mxu0 0.0
    %1837 = vmatpush1.msra.mxu0 0.0
    %1838 = vmatprep.subr.mxu0 0.0
    %1839 = vmatpush1.msra.mxu0 0.0
    %1840 = vmatprep.subr.mxu0 0.0
    %1841 = vmatpush1.msra.mxu0 0.0
    %1842 = vmatprep.subr.mxu0 0.0
    %1843 = vmatpush1.msra.mxu0 0.0
    %1844 = vmatprep.subr.mxu0 0.0
    %1845 = vmatpush1.msra.mxu0 0.0
    %1846 = vmatprep.subr.mxu0 0.0
    %1847 = vmatpush1.msra.mxu0 0.0
    %1848 = vmatprep.subr.mxu0 0.0
    %1849 = vmatpush1.msra.mxu0 0.0
    %1850 = vmatprep.subr.mxu0 0.0
    %1851 = vmatpush1.msra.mxu0 0.0
    %1852 = vmatprep.subr.mxu0 0.0
    %1853 = vmatpush1.msra.mxu0 0.0
    %1854 = vmatprep.subr.mxu0 0.0
    %1855 = vmatpush1.msra.mxu0 0.0
    %1856 = vmatprep.subr.mxu0 0.0
    %1857 = vmatpush1.msra.mxu0 0.0
    %1858 = vmatprep.subr.mxu0 0.0
    %1859 = vmatpush1.msra.mxu0 0.0
    %1860 = vmatprep.subr.mxu0 0.0
    %1861 = vmatpush1.msra.mxu0 0.0
    %1862 = vmatprep.subr.mxu0 0.0
    %1863 = vmatpush1.msra.mxu0 0.0
    %1864 = vmatprep.subr.mxu0 0.0
    %1865 = vmatpush1.msra.mxu0 0.0
    %1866 = vmatprep.mubr.f32.mxu0 0.0
    %1867 = vmatmul.mubr.f32.gmra.mrb[0].mxu0 %v1703
    %v1868 = vpop.f32.mrb[0].mxu0
    %v1869 = vadd.f32 %v1800, %v1868
    %v1870 = vpop.f32.mrb[0].mxu0
    %1871 = vdwg.mxu0
    %v1872 = vxor.u32 %v1869, 2147483648
    %v1873 = vmul.f32 %v1872, 1.442695
    %v1874 = vpow.pop %v1873
    %v1875 = vadd.f32 %v1874, 1.0
    %v1876 = vrcp.pop %v1875
    %v1877 = vmul.f32 1.0, %v1876
    %v1878 = vtanh.pop %v1869
    %v1879 = vmul.f32 %v1877, %v1618
    %1881 = vrot.lane.b32.xlu0 %v1878, 32
    %v1882 = vpop.permute.xlu0 %1881
    %v1884 = vmul.f32 %v1877, %v1882
    %1886 = vrot.lane.b32.xlu0 %v1884, 32
    %v1887 = vpop.permute.xlu0 %1886
    %v1889 = vadd.f32 %v1879, %v1887
    %v1890 = vtanh.pop %v1889
    %1892 = vrot.lane.b32.xlu0 %v1890, 32
    %v1893 = vpop.permute.xlu0 %1892
    %v1895 = vmul.f32 %v1877, %v1893
    %1897 = vrot.lane.b32.xlu0 %v1799, 64
    %v1898 = vpop.permute.xlu0 %1897
    %v1899 = vsel %vm177, %v1898, 0
    %1901 = vmatprep.subr.mxu0 0.0
    %1902 = vmatpush1.msra.mxu0 %v166
    %1903 = vmatprep.subr.mxu0 0.0
    %1904 = vmatpush1.msra.mxu0 %v167
    %1905 = vmatprep.subr.mxu0 0.0
    %1906 = vmatpush1.msra.mxu0 %v168
    %1907 = vmatprep.subr.mxu0 0.0
    %1908 = vmatpush1.msra.mxu0 %v169
    %1909 = vmatprep.subr.mxu0 0.0
    %1910 = vmatpush1.msra.mxu0 0.0
    %1911 = vmatprep.subr.mxu0 0.0
    %1912 = vmatpush1.msra.mxu0 0.0
    %1913 = vmatprep.subr.mxu0 0.0
    %1914 = vmatpush1.msra.mxu0 0.0
    %1915 = vmatprep.subr.mxu0 0.0
    %1916 = vmatpush1.msra.mxu0 0.0
    %1917 = vmatprep.subr.mxu0 0.0
    %1918 = vmatpush1.msra.mxu0 0.0
    %1919 = vmatprep.subr.mxu0 0.0
    %1920 = vmatpush1.msra.mxu0 0.0
    %1921 = vmatprep.subr.mxu0 0.0
    %1922 = vmatpush1.msra.mxu0 0.0
    %1923 = vmatprep.subr.mxu0 0.0
    %1924 = vmatpush1.msra.mxu0 0.0
    %1925 = vmatprep.subr.mxu0 0.0
    %1926 = vmatpush1.msra.mxu0 0.0
    %1927 = vmatprep.subr.mxu0 0.0
    %1928 = vmatpush1.msra.mxu0 0.0
    %1929 = vmatprep.subr.mxu0 0.0
    %1930 = vmatpush1.msra.mxu0 0.0
    %1931 = vmatprep.subr.mxu0 0.0
    %1932 = vmatpush1.msra.mxu0 0.0
    %1933 = vmatprep.subr.mxu0 0.0
    %1934 = vmatpush1.msra.mxu0 0.0
    %1935 = vmatprep.subr.mxu0 0.0
    %1936 = vmatpush1.msra.mxu0 0.0
    %1937 = vmatprep.subr.mxu0 0.0
    %1938 = vmatpush1.msra.mxu0 0.0
    %1939 = vmatprep.subr.mxu0 0.0
    %1940 = vmatpush1.msra.mxu0 0.0
    %1941 = vmatprep.subr.mxu0 0.0
    %1942 = vmatpush1.msra.mxu0 0.0
    %1943 = vmatprep.subr.mxu0 0.0
    %1944 = vmatpush1.msra.mxu0 0.0
    %1945 = vmatprep.subr.mxu0 0.0
    %1946 = vmatpush1.msra.mxu0 0.0
    %1947 = vmatprep.subr.mxu0 0.0
    %1948 = vmatpush1.msra.mxu0 0.0
    %1949 = vmatprep.subr.mxu0 0.0
    %1950 = vmatpush1.msra.mxu0 0.0
    %1951 = vmatprep.subr.mxu0 0.0
    %1952 = vmatpush1.msra.mxu0 0.0
    %1953 = vmatprep.subr.mxu0 0.0
    %1954 = vmatpush1.msra.mxu0 0.0
    %1955 = vmatprep.subr.mxu0 0.0
    %1956 = vmatpush1.msra.mxu0 0.0
    %1957 = vmatprep.subr.mxu0 0.0
    %1958 = vmatpush1.msra.mxu0 0.0
    %1959 = vmatprep.subr.mxu0 0.0
    %1960 = vmatpush1.msra.mxu0 0.0
    %1961 = vmatprep.subr.mxu0 0.0
    %1962 = vmatpush1.msra.mxu0 0.0
    %1963 = vmatprep.subr.mxu0 0.0
    %1964 = vmatpush1.msra.mxu0 0.0
    %1965 = vmatprep.mubr.f32.mxu0 0.0
    %1966 = vmatmul.mubr.f32.gmra.mrb[0].mxu0 %v1899
    %v1967 = vpop.f32.mrb[0].mxu0
    %v1968 = vadd.f32 0.0, %v1967
    %v1969 = vpop.f32.mrb[0].mxu0
    %1970 = vdwg.mxu0
    %1972 = vrot.lane.b32.xlu0 %v1895, 64
    %v1973 = vpop.permute.xlu0 %1972
    %v1974 = vsel %vm177, %v1973, 0
    %1976 = vmatprep.subr.mxu0 0.0
    %1977 = vmatpush1.msra.mxu0 %v162
    %1978 = vmatprep.subr.mxu0 0.0
    %1979 = vmatpush1.msra.mxu0 %v163
    %1980 = vmatprep.subr.mxu0 0.0
    %1981 = vmatpush1.msra.mxu0 %v164
    %1982 = vmatprep.subr.mxu0 0.0
    %1983 = vmatpush1.msra.mxu0 %v165
    %1984 = vmatprep.subr.mxu0 0.0
    %1985 = vmatpush1.msra.mxu0 0.0
    %1986 = vmatprep.subr.mxu0 0.0
    %1987 = vmatpush1.msra.mxu0 0.0
    %1988 = vmatprep.subr.mxu0 0.0
    %1989 = vmatpush1.msra.mxu0 0.0
    %1990 = vmatprep.subr.mxu0 0.0
    %1991 = vmatpush1.msra.mxu0 0.0
    %1992 = vmatprep.subr.mxu0 0.0
    %1993 = vmatpush1.msra.mxu0 0.0
    %1994 = vmatprep.subr.mxu0 0.0
    %1995 = vmatpush1.msra.mxu0 0.0
    %1996 = vmatprep.subr.mxu0 0.0
    %1997 = vmatpush1.msra.mxu0 0.0
    %1998 = vmatprep.subr.mxu0 0.0
    %1999 = vmatpush1.msra.mxu0 0.0
    %2000 = vmatprep.subr.mxu0 0.0
    %2001 = vmatpush1.msra.mxu0 0.0
    %2002 = vmatprep.subr.mxu0 0.0
    %2003 = vmatpush1.msra.mxu0 0.0
    %2004 = vmatprep.subr.mxu0 0.0
    %2005 = vmatpush1.msra.mxu0 0.0
    %2006 = vmatprep.subr.mxu0 0.0
    %2007 = vmatpush1.msra.mxu0 0.0
    %2008 = vmatprep.subr.mxu0 0.0
    %2009 = vmatpush1.msra.mxu0 0.0
    %2010 = vmatprep.subr.mxu0 0.0
    %2011 = vmatpush1.msra.mxu0 0.0
    %2012 = vmatprep.subr.mxu0 0.0
    %2013 = vmatpush1.msra.mxu0 0.0
    %2014 = vmatprep.subr.mxu0 0.0
    %2015 = vmatpush1.msra.mxu0 0.0
    %2016 = vmatprep.subr.mxu0 0.0
    %2017 = vmatpush1.msra.mxu0 0.0
    %2018 = vmatprep.subr.mxu0 0.0
    %2019 = vmatpush1.msra.mxu0 0.0
    %2020 = vmatprep.subr.mxu0 0.0
    %2021 = vmatpush1.msra.mxu0 0.0
    %2022 = vmatprep.subr.mxu0 0.0
    %2023 = vmatpush1.msra.mxu0 0.0
    %2024 = vmatprep.subr.mxu0 0.0
    %2025 = vmatpush1.msra.mxu0 0.0
    %2026 = vmatprep.subr.mxu0 0.0
    %2027 = vmatpush1.msra.mxu0 0.0
    %2028 = vmatprep.subr.mxu0 0.0
    %2029 = vmatpush1.msra.mxu0 0.0
    %2030 = vmatprep.subr.mxu0 0.0
    %2031 = vmatpush1.msra.mxu0 0.0
    %2032 = vmatprep.subr.mxu0 0.0
    %2033 = vmatpush1.msra.mxu0 0.0
    %2034 = vmatprep.subr.mxu0 0.0
    %2035 = vmatpush1.msra.mxu0 0.0
    %2036 = vmatprep.subr.mxu0 0.0
    %2037 = vmatpush1.msra.mxu0 0.0
    %2038 = vmatprep.subr.mxu0 0.0
    %2039 = vmatpush1.msra.mxu0 0.0
    %2040 = vmatprep.mubr.f32.mxu0 0.0
    %2041 = vmatmul.mubr.f32.gmra.mrb[0].mxu0 %v1974
    %v2042 = vpop.f32.mrb[0].mxu0
    %v2043 = vadd.f32 %v1968, %v2042
    %v2044 = vpop.f32.mrb[0].mxu0
    %2045 = vdwg.mxu0
    %v2046 = vadd.f32 %v2043, %v175
    %v2047 = vxor.u32 %v2046, 2147483648
    %v2048 = vmul.f32 %v2047, 1.442695
    %v2049 = vpow.pop %v2048
    %v2050 = vadd.f32 %v2049, 1.0
    %v2051 = vrcp.pop %v2050
    %v2052 = vmul.f32 1.0, %v2051
    %v2053 = vtanh.pop %v2046
    %v2054 = vmul.f32 %v2052, %v1793
    %2056 = vrot.lane.b32.xlu0 %v2053, 32
    %v2057 = vpop.permute.xlu0 %2056
    %v2059 = vmul.f32 %v2052, %v2057
    %2061 = vrot.lane.b32.xlu0 %v2059, 32
    %v2062 = vpop.permute.xlu0 %2061
    %v2064 = vadd.f32 %v2054, %v2062
    %v2065 = vtanh.pop %v2064
    %2067 = vrot.lane.b32.xlu0 %v2065, 32
    %v2068 = vpop.permute.xlu0 %2067
    %v2070 = vmul.f32 %v2052, %v2068
    %v2071 = vrot.slane %v155, 6
    %2073 = vmatprep.subr.mxu0 0.0
    %2074 = vmatpush1.msra.mxu0 %v158
    %2075 = vmatprep.subr.mxu0 0.0
    %2076 = vmatpush1.msra.mxu0 %v159
    %2077 = vmatprep.subr.mxu0 0.0
    %2078 = vmatpush1.msra.mxu0 %v160
    %2079 = vmatprep.subr.mxu0 0.0
    %2080 = vmatpush1.msra.mxu0 %v161
    %2081 = vmatprep.subr.mxu0 0.0
    %2082 = vmatpush1.msra.mxu0 0.0
    %2083 = vmatprep.subr.mxu0 0.0
    %2084 = vmatpush1.msra.mxu0 0.0
    %2085 = vmatprep.subr.mxu0 0.0
    %2086 = vmatpush1.msra.mxu0 0.0
    %2087 = vmatprep.subr.mxu0 0.0
    %2088 = vmatpush1.msra.mxu0 0.0
    %2089 = vmatprep.subr.mxu0 0.0
    %2090 = vmatpush1.msra.mxu0 0.0
    %2091 = vmatprep.subr.mxu0 0.0
    %2092 = vmatpush1.msra.mxu0 0.0
    %2093 = vmatprep.subr.mxu0 0.0
    %2094 = vmatpush1.msra.mxu0 0.0
    %2095 = vmatprep.subr.mxu0 0.0
    %2096 = vmatpush1.msra.mxu0 0.0
    %2097 = vmatprep.subr.mxu0 0.0
    %2098 = vmatpush1.msra.mxu0 0.0
    %2099 = vmatprep.subr.mxu0 0.0
    %2100 = vmatpush1.msra.mxu0 0.0
    %2101 = vmatprep.subr.mxu0 0.0
    %2102 = vmatpush1.msra.mxu0 0.0
    %2103 = vmatprep.subr.mxu0 0.0
    %2104 = vmatpush1.msra.mxu0 0.0
    %2105 = vmatprep.subr.mxu0 0.0
    %2106 = vmatpush1.msra.mxu0 0.0
    %2107 = vmatprep.subr.mxu0 0.0
    %2108 = vmatpush1.msra.mxu0 0.0
    %2109 = vmatprep.subr.mxu0 0.0
    %2110 = vmatpush1.msra.mxu0 0.0
    %2111 = vmatprep.subr.mxu0 0.0
    %2112 = vmatpush1.msra.mxu0 0.0
    %2113 = vmatprep.subr.mxu0 0.0
    %2114 = vmatpush1.msra.mxu0 0.0
    %2115 = vmatprep.subr.mxu0 0.0
    %2116 = vmatpush1.msra.mxu0 0.0
    %2117 = vmatprep.subr.mxu0 0.0
    %2118 = vmatpush1.msra.mxu0 0.0
    %2119 = vmatprep.subr.mxu0 0.0
    %2120 = vmatpush1.msra.mxu0 0.0
    %2121 = vmatprep.subr.mxu0 0.0
    %2122 = vmatpush1.msra.mxu0 0.0
    %2123 = vmatprep.subr.mxu0 0.0
    %2124 = vmatpush1.msra.mxu0 0.0
    %2125 = vmatprep.subr.mxu0 0.0
    %2126 = vmatpush1.msra.mxu0 0.0
    %2127 = vmatprep.subr.mxu0 0.0
    %2128 = vmatpush1.msra.mxu0 0.0
    %2129 = vmatprep.subr.mxu0 0.0
    %2130 = vmatpush1.msra.mxu0 0.0
    %2131 = vmatprep.subr.mxu0 0.0
    %2132 = vmatpush1.msra.mxu0 0.0
    %2133 = vmatprep.subr.mxu0 0.0
    %2134 = vmatpush1.msra.mxu0 0.0
    %2135 = vmatprep.subr.mxu0 0.0
    %2136 = vmatpush1.msra.mxu0 0.0
    %2137 = vmatprep.mubr.f32.mxu0 0.0
    %2138 = vmatmul.mubr.f32.gmra.mrb[0].mxu0 %v1974
    %v2139 = vpop.f32.mrb[0].mxu0
    %v2140 = vadd.f32 %v2071, %v2139
    %v2141 = vpop.f32.mrb[0].mxu0
    %2142 = vdwg.mxu0
    %v2143 = vxor.u32 %v2140, 2147483648
    %v2144 = vmul.f32 %v2143, 1.442695
    %v2145 = vpow.pop %v2144
    %v2146 = vadd.f32 %v2145, 1.0
    %v2147 = vrcp.pop %v2146
    %v2148 = vmul.f32 1.0, %v2147
    %v2149 = vtanh.pop %v2140
    %v2150 = vmul.f32 %v2148, %v1889
    %2152 = vrot.lane.b32.xlu0 %v2149, 32
    %v2153 = vpop.permute.xlu0 %2152
    %v2155 = vmul.f32 %v2148, %v2153
    %2157 = vrot.lane.b32.xlu0 %v2155, 32
    %v2158 = vpop.permute.xlu0 %2157
    %v2160 = vadd.f32 %v2150, %v2158
    %v2161 = vtanh.pop %v2160
    %2163 = vrot.lane.b32.xlu0 %v2161, 32
    %v2164 = vpop.permute.xlu0 %2163
    %v2166 = vmul.f32 %v2148, %v2164
    %2168 = vrot.lane.b32.xlu0 %v2070, 64
    %v2169 = vpop.permute.xlu0 %2168
    %v2170 = vsel %vm177, %v2169, 0
    %2172 = vmatprep.subr.mxu0 0.0
    %2173 = vmatpush1.msra.mxu0 %v166
    %2174 = vmatprep.subr.mxu0 0.0
    %2175 = vmatpush1.msra.mxu0 %v167
    %2176 = vmatprep.subr.mxu0 0.0
    %2177 = vmatpush1.msra.mxu0 %v168
    %2178 = vmatprep.subr.mxu0 0.0
    %2179 = vmatpush1.msra.mxu0 %v169
    %2180 = vmatprep.subr.mxu0 0.0
    %2181 = vmatpush1.msra.mxu0 0.0
    %2182 = vmatprep.subr.mxu0 0.0
    %2183 = vmatpush1.msra.mxu0 0.0
    %2184 = vmatprep.subr.mxu0 0.0
    %2185 = vmatpush1.msra.mxu0 0.0
    %2186 = vmatprep.subr.mxu0 0.0
    %2187 = vmatpush1.msra.mxu0 0.0
    %2188 = vmatprep.subr.mxu0 0.0
    %2189 = vmatpush1.msra.mxu0 0.0
    %2190 = vmatprep.subr.mxu0 0.0
    %2191 = vmatpush1.msra.mxu0 0.0
    %2192 = vmatprep.subr.mxu0 0.0
    %2193 = vmatpush1.msra.mxu0 0.0
    %2194 = vmatprep.subr.mxu0 0.0
    %2195 = vmatpush1.msra.mxu0 0.0
    %2196 = vmatprep.subr.mxu0 0.0
    %2197 = vmatpush1.msra.mxu0 0.0
    %2198 = vmatprep.subr.mxu0 0.0
    %2199 = vmatpush1.msra.mxu0 0.0
    %2200 = vmatprep.subr.mxu0 0.0
    %2201 = vmatpush1.msra.mxu0 0.0
    %2202 = vmatprep.subr.mxu0 0.0
    %2203 = vmatpush1.msra.mxu0 0.0
    %2204 = vmatprep.subr.mxu0 0.0
    %2205 = vmatpush1.msra.mxu0 0.0
    %2206 = vmatprep.subr.mxu0 0.0
    %2207 = vmatpush1.msra.mxu0 0.0
    %2208 = vmatprep.subr.mxu0 0.0
    %2209 = vmatpush1.msra.mxu0 0.0
    %2210 = vmatprep.subr.mxu0 0.0
    %2211 = vmatpush1.msra.mxu0 0.0
    %2212 = vmatprep.subr.mxu0 0.0
    %2213 = vmatpush1.msra.mxu0 0.0
    %2214 = vmatprep.subr.mxu0 0.0
    %2215 = vmatpush1.msra.mxu0 0.0
    %2216 = vmatprep.subr.mxu0 0.0
    %2217 = vmatpush1.msra.mxu0 0.0
    %2218 = vmatprep.subr.mxu0 0.0
    %2219 = vmatpush1.msra.mxu0 0.0
    %2220 = vmatprep.subr.mxu0 0.0
    %2221 = vmatpush1.msra.mxu0 0.0
    %2222 = vmatprep.subr.mxu0 0.0
    %2223 = vmatpush1.msra.mxu0 0.0
    %2224 = vmatprep.subr.mxu0 0.0
    %2225 = vmatpush1.msra.mxu0 0.0
    %2226 = vmatprep.subr.mxu0 0.0
    %2227 = vmatpush1.msra.mxu0 0.0
    %2228 = vmatprep.subr.mxu0 0.0
    %2229 = vmatpush1.msra.mxu0 0.0
    %2230 = vmatprep.subr.mxu0 0.0
    %2231 = vmatpush1.msra.mxu0 0.0
    %2232 = vmatprep.subr.mxu0 0.0
    %2233 = vmatpush1.msra.mxu0 0.0
    %2234 = vmatprep.subr.mxu0 0.0
    %2235 = vmatpush1.msra.mxu0 0.0
    %2236 = vmatprep.mubr.f32.mxu0 0.0
    %2237 = vmatmul.mubr.f32.gmra.mrb[0].mxu0 %v2170
    %v2238 = vpop.f32.mrb[0].mxu0
    %v2239 = vadd.f32 0.0, %v2238
    %v2240 = vpop.f32.mrb[0].mxu0
    %2241 = vdwg.mxu0
    %2243 = vrot.lane.b32.xlu0 %v2166, 64
    %v2244 = vpop.permute.xlu0 %2243
    %v2245 = vsel %vm177, %v2244, 0
    %2247 = vmatprep.subr.mxu0 0.0
    %2248 = vmatpush1.msra.mxu0 %v162
    %2249 = vmatprep.subr.mxu0 0.0
    %2250 = vmatpush1.msra.mxu0 %v163
    %2251 = vmatprep.subr.mxu0 0.0
    %2252 = vmatpush1.msra.mxu0 %v164
    %2253 = vmatprep.subr.mxu0 0.0
    %2254 = vmatpush1.msra.mxu0 %v165
    %2255 = vmatprep.subr.mxu0 0.0
    %2256 = vmatpush1.msra.mxu0 0.0
    %2257 = vmatprep.subr.mxu0 0.0
    %2258 = vmatpush1.msra.mxu0 0.0
    %2259 = vmatprep.subr.mxu0 0.0
    %2260 = vmatpush1.msra.mxu0 0.0
    %2261 = vmatprep.subr.mxu0 0.0
    %2262 = vmatpush1.msra.mxu0 0.0
    %2263 = vmatprep.subr.mxu0 0.0
    %2264 = vmatpush1.msra.mxu0 0.0
    %2265 = vmatprep.subr.mxu0 0.0
    %2266 = vmatpush1.msra.mxu0 0.0
    %2267 = vmatprep.subr.mxu0 0.0
    %2268 = vmatpush1.msra.mxu0 0.0
    %2269 = vmatprep.subr.mxu0 0.0
    %2270 = vmatpush1.msra.mxu0 0.0
    %2271 = vmatprep.subr.mxu0 0.0
    %2272 = vmatpush1.msra.mxu0 0.0
    %2273 = vmatprep.subr.mxu0 0.0
    %2274 = vmatpush1.msra.mxu0 0.0
    %2275 = vmatprep.subr.mxu0 0.0
    %2276 = vmatpush1.msra.mxu0 0.0
    %2277 = vmatprep.subr.mxu0 0.0
    %2278 = vmatpush1.msra.mxu0 0.0
    %2279 = vmatprep.subr.mxu0 0.0
    %2280 = vmatpush1.msra.mxu0 0.0
    %2281 = vmatprep.subr.mxu0 0.0
    %2282 = vmatpush1.msra.mxu0 0.0
    %2283 = vmatprep.subr.mxu0 0.0
    %2284 = vmatpush1.msra.mxu0 0.0
    %2285 = vmatprep.subr.mxu0 0.0
    %2286 = vmatpush1.msra.mxu0 0.0
    %2287 = vmatprep.subr.mxu0 0.0
    %2288 = vmatpush1.msra.mxu0 0.0
    %2289 = vmatprep.subr.mxu0 0.0
    %2290 = vmatpush1.msra.mxu0 0.0
    %2291 = vmatprep.subr.mxu0 0.0
    %2292 = vmatpush1.msra.mxu0 0.0
    %2293 = vmatprep.subr.mxu0 0.0
    %2294 = vmatpush1.msra.mxu0 0.0
    %2295 = vmatprep.subr.mxu0 0.0
    %2296 = vmatpush1.msra.mxu0 0.0
    %2297 = vmatprep.subr.mxu0 0.0
    %2298 = vmatpush1.msra.mxu0 0.0
    %2299 = vmatprep.subr.mxu0 0.0
    %2300 = vmatpush1.msra.mxu0 0.0
    %2301 = vmatprep.subr.mxu0 0.0
    %2302 = vmatpush1.msra.mxu0 0.0
    %2303 = vmatprep.subr.mxu0 0.0
    %2304 = vmatpush1.msra.mxu0 0.0
    %2305 = vmatprep.subr.mxu0 0.0
    %2306 = vmatpush1.msra.mxu0 0.0
    %2307 = vmatprep.subr.mxu0 0.0
    %2308 = vmatpush1.msra.mxu0 0.0
    %2309 = vmatprep.subr.mxu0 0.0
    %2310 = vmatpush1.msra.mxu0 0.0
    %2311 = vmatprep.mubr.f32.mxu0 0.0
    %2312 = vmatmul.mubr.f32.gmra.mrb[0].mxu0 %v2245
    %v2313 = vpop.f32.mrb[0].mxu0
    %v2314 = vadd.f32 %v2239, %v2313
    %v2315 = vpop.f32.mrb[0].mxu0
    %2316 = vdwg.mxu0
    %v2317 = vadd.f32 %v2314, %v175
    %v2318 = vxor.u32 %v2317, 2147483648
    %v2319 = vmul.f32 %v2318, 1.442695
    %v2320 = vpow.pop %v2319
    %v2321 = vadd.f32 %v2320, 1.0
    %v2322 = vrcp.pop %v2321
    %v2323 = vmul.f32 1.0, %v2322
    %v2324 = vtanh.pop %v2317
    %v2325 = vmul.f32 %v2323, %v2064
    %2327 = vrot.lane.b32.xlu0 %v2324, 32
    %v2328 = vpop.permute.xlu0 %2327
    %v2330 = vmul.f32 %v2323, %v2328
    %2332 = vrot.lane.b32.xlu0 %v2330, 32
    %v2333 = vpop.permute.xlu0 %2332
    %v2335 = vadd.f32 %v2325, %v2333
    %v2336 = vtanh.pop %v2335
    %2338 = vrot.lane.b32.xlu0 %v2336, 32
    %v2339 = vpop.permute.xlu0 %2338
    %v2341 = vmul.f32 %v2323, %v2339
    %v2342 = vld [vmem:[%s7] sm:$0x1]
    %v2344 = vlaneseq
    %v2345 = vshrl.u32 %v2344, 7
    %v2346 = vsub.s32 0, %v2345
    %v2347 = vrot.slane %v2342, %v2346
    %2348 = vrot.lane.b32.xlu0 %v2347, 64
    %v2349 = vpop.permute.xlu0 %2348
    %v2351 = vmul.f32 %v2341, %v2349
    %2353 = vrot.lane.b32.xlu0 %v2351, 64
    %v2354 = vpop.permute.xlu0 %2353
    %vm2356 = vcmask 254976
    %v2357 = vsel %vm2356, %v2354, 0.0
    %2358 = vadd.xlane.f32.xlu0 %v2357
    %v2359 = vpop.xlane.xlu0 %2358
    %v2360 = vld [vmem:[#allocation2] sm:$0x1]
    %v2362 = vlaneseq
    %v2363 = vshrl.u32 %v2362, 7
    %v2364 = vsub.s32 0, %v2363
    %v2365 = vrot.slane %v2360, %v2364
    %v2367 = vadd.f32 %v2359, %v2365
    %vm2368 = vcmask 1024
    %2369 = vst.msk [vmem:[%s9] sm:$0x3] %vm2368, %v2367
    // Predicated region
    $region46: #{lstm_model_forward.1} parent=1 // pred_check
      _
    $region47: #{lstm_model_forward.1} parent=1 // pred_check_branch
      %2371 = sbr.rel (0) target = $region49
    $region48: #{lstm_model_forward.1} parent=1 // pred_region
      _
    $region49: #{lstm_model_forward.1} parent=1 // pred_fallthru
      _
    // Predicated region
    $region50: #{lstm_model_forward.1} parent=1 // pred_check
      _
    $region51: #{lstm_model_forward.1} parent=1 // pred_check_branch
      %2373 = sbr.rel (0) target = $region53
    $region52: #{lstm_model_forward.1} parent=1 // pred_region
      _
    $region53: #{lstm_model_forward.1} parent=1 // pred_fallthru
      _
    %2374 = vsyncpa [#allocation4], 1
    %2375 = vsyncpa [#allocation6], 1

</llo_original>
